<compile_context>
chip_gen: v6e
topology: v6e:2x2x1
jax: 0.10.0
libtpu: 0.0.40
codegen_flags: <defaults>
</compile_context>

<pallas_src>
import math

import jax
import jax.numpy as jnp
from jax import lax
from jax.experimental import pallas as pl
from jax.experimental.pallas import tpu as pltpu

# ----------------------------- config (small, synthetic) -----------------------------
B, T = 2, 8          # batch, sequence length (block_size)
C = 32               # n_embd
NH = 2               # n_head
HD = C // NH         # head dim
NL = 2               # n_layer
V = 64               # vocab_size
V_PAD = 128          # vocab padded to a full lane width for lane-dense output stores
DTYPE = jnp.float32
LN_EPS = 1e-5
ATT_SCALE = 1.0 / math.sqrt(HD)


# ----------------------------------- in-kernel helpers ----------------------------------
def _layernorm(x, g, b):
    mean = jnp.mean(x, axis=-1, keepdims=True)
    var = jnp.mean((x - mean) ** 2, axis=-1, keepdims=True)
    return (x - mean) * lax.rsqrt(var + LN_EPS) * g + b


def _gelu(x):
    # GELU (tanh approximation, as in GPT-2)
    return 0.5 * x * (1.0 + jnp.tanh(0.7978845608028654 * (x + 0.044715 * x * x * x)))


# ------------------------------- fused GPT forward kernel -------------------------------
def gpt_kernel(tok_ref, wte_ref, wpe_ref,
               ln1_g_ref, ln1_b_ref, attn_w_ref, attn_b_ref,
               proj_w_ref, proj_b_ref, ln2_g_ref, ln2_b_ref,
               fc_w_ref, fc_b_ref, mlp_w_ref, mlp_b_ref,
               lnf_g_ref, lnf_b_ref, out_ref):
    # ---- token + positional embedding (one-hot matmul gather, stays on the MXU) ----
    tok = tok_ref[...]                                            # (T, 1) int32
    wte = wte_ref[...].astype(jnp.float32)                        # (V_PAD, C)
    vocab_iota = lax.broadcasted_iota(jnp.int32, (T, V_PAD), 1)
    one_hot = (vocab_iota == tok).astype(jnp.float32)             # (T, V_PAD)
    h = jnp.dot(one_hot, wte, preferred_element_type=jnp.float32)  # (T, C) tok_emb
    h = h + wpe_ref[...].astype(jnp.float32)                      # + pos_emb

    # ---- transformer blocks (unrolled, all activations resident in VMEM/vregs) ----
    for l in range(NL):
        # LN1 fused with QKV projection
        ln1 = _layernorm(h, ln1_g_ref[l], ln1_b_ref[l])
        qkv = jnp.dot(ln1, attn_w_ref[l],
                      preferred_element_type=jnp.float32) + attn_b_ref[l]   # (T, 3C)

        # split heads directly from the QKV slab (no HBM transposes)
        q = jnp.stack([qkv[:, hh * HD:(hh + 1) * HD] for hh in range(NH)], axis=0)
        k = jnp.stack([qkv[:, C + hh * HD:C + (hh + 1) * HD] for hh in range(NH)], axis=0)
        v = jnp.stack([qkv[:, 2 * C + hh * HD:2 * C + (hh + 1) * HD] for hh in range(NH)], axis=0)

        # causal attention over all heads at once
        s = jnp.einsum('hqd,hkd->hqk', q, k,
                       preferred_element_type=jnp.float32) * ATT_SCALE       # (NH, T, T)
        row = lax.broadcasted_iota(jnp.int32, s.shape, 1)
        col = lax.broadcasted_iota(jnp.int32, s.shape, 2)
        s = jnp.where(col <= row, s, -1e30)
        m = jnp.max(s, axis=-1, keepdims=True)
        p = jnp.exp(s - m)
        denom = jnp.sum(p, axis=-1, keepdims=True)
        p = p * pl.reciprocal(denom, approx=True)
        o = jnp.einsum('hqk,hkd->hqd', p, v,
                       preferred_element_type=jnp.float32)                   # (NH, T, HD)
        attn_out = jnp.concatenate([o[hh] for hh in range(NH)], axis=-1)     # (T, C)

        proj = jnp.dot(attn_out, proj_w_ref[l],
                       preferred_element_type=jnp.float32) + proj_b_ref[l]
        h = h + proj

        # LN2 fused with MLP
        ln2 = _layernorm(h, ln2_g_ref[l], ln2_b_ref[l])
        fc = jnp.dot(ln2, fc_w_ref[l],
                     preferred_element_type=jnp.float32) + fc_b_ref[l]       # (T, 4C)
        fc = _gelu(fc)
        mlp = jnp.dot(fc, mlp_w_ref[l],
                      preferred_element_type=jnp.float32) + mlp_b_ref[l]     # (T, C)
        h = h + mlp

    # ---- final LN + tied lm_head (contract on C in-kernel, no transposed weight copy) ----
    lnf = _layernorm(h, lnf_g_ref[...], lnf_b_ref[...])
    logits = lax.dot_general(lnf, wte, (((1,), (1,)), ((), ())),
                             preferred_element_type=jnp.float32)             # (T, V_PAD)
    out_ref[...] = logits.astype(out_ref.dtype)                              # lane-dense store


# ------------------------------------- wrapper -----------------------------------------
def gpt_forward(tokens, params):
    tok2d = tokens.reshape(B * T, 1).astype(jnp.int32)

    def full(shape):
        return pl.BlockSpec(shape, lambda i, _s=shape: (0,) * len(_s))

    in_specs = [
        pl.BlockSpec((T, 1), lambda i: (i, 0)),          # tokens, per-batch block
        full((V_PAD, C)),                                # wte (vocab padded to 128)
        full((T, C)),                                    # wpe
        full((NL, 1, C)), full((NL, 1, C)),              # ln1 gamma/beta
        full((NL, C, 3 * C)), full((NL, 1, 3 * C)),      # attn qkv weight/bias
        full((NL, C, C)), full((NL, 1, C)),              # attn proj weight/bias
        full((NL, 1, C)), full((NL, 1, C)),              # ln2 gamma/beta
        full((NL, C, 4 * C)), full((NL, 1, 4 * C)),      # mlp fc weight/bias
        full((NL, 4 * C, C)), full((NL, 1, C)),          # mlp proj weight/bias
        full((1, C)), full((1, C)),                      # final ln gamma/beta
    ]
    out_spec = pl.BlockSpec((T, V_PAD), lambda i: (i, 0))

    logits_pad = pl.pallas_call(
        gpt_kernel,
        out_shape=jax.ShapeDtypeStruct((B * T, V_PAD), DTYPE),
        grid=(B,),
        in_specs=in_specs,
        out_specs=out_spec,
        compiler_params=pltpu.CompilerParams(dimension_semantics=("parallel",)),
    )(tok2d, params["wte_pad"], params["wpe"],
      params["ln1_g"], params["ln1_b"], params["attn_w"], params["attn_b"],
      params["proj_w"], params["proj_b"], params["ln2_g"], params["ln2_b"],
      params["fc_w"], params["fc_b"], params["mlp_w"], params["mlp_b"],
      params["lnf_g"], params["lnf_b"])

    return logits_pad[:, :V].reshape(B, T, V)


# -------------------------------- parameter construction ------------------------------
def init_params(key):
    def nrm(k, shape, std=0.02):
        return (std * jax.random.normal(k, shape)).astype(DTYPE)

    keys = jax.random.split(key, 2 + NL * 4)
    wte = nrm(keys[0], (V, C))
    wte_pad = jnp.zeros((V_PAD, C), DTYPE).at[:V].set(wte)

    params = {
        "wte_pad": wte_pad,
        "wpe": nrm(keys[1], (T, C)),
        "lnf_g": jnp.ones((1, C), DTYPE),
        "lnf_b": jnp.zeros((1, C), DTYPE),
    }
    names = ["ln1_g", "ln1_b", "attn_w", "attn_b", "proj_w", "proj_b",
             "ln2_g", "ln2_b", "fc_w", "fc_b", "mlp_w", "mlp_b"]
    blk = {n: [] for n in names}
    for l in range(NL):
        k0, k1, k2, k3 = jax.random.split(keys[2 + l], 4)
        blk["ln1_g"].append(jnp.ones((1, C), DTYPE))
        blk["ln1_b"].append(jnp.zeros((1, C), DTYPE))
        blk["attn_w"].append(nrm(k0, (C, 3 * C)))
        blk["attn_b"].append(jnp.zeros((1, 3 * C), DTYPE))
        blk["proj_w"].append(nrm(k1, (C, C)))
        blk["proj_b"].append(jnp.zeros((1, C), DTYPE))
        blk["ln2_g"].append(jnp.ones((1, C), DTYPE))
        blk["ln2_b"].append(jnp.zeros((1, C), DTYPE))
        blk["fc_w"].append(nrm(k2, (C, 4 * C)))
        blk["fc_b"].append(jnp.zeros((1, 4 * C), DTYPE))
        blk["mlp_w"].append(nrm(k3, (4 * C, C)))
        blk["mlp_b"].append(jnp.zeros((1, C), DTYPE))
    for n in names:
        params[n] = jnp.stack(blk[n], axis=0)   # leading layer axis (NL, ...)
    return params


# ---------------------------------------- main -----------------------------------------
if __name__ == "__main__":
    key = jax.random.PRNGKey(0)
    pkey, xkey = jax.random.split(key)
    params = init_params(pkey)
    x = jax.random.randint(xkey, (B, T), 0, V, dtype=jnp.int32)   # tokenized input

    logits = jax.jit(gpt_forward)(x, params)
    jax.block_until_ready(logits)
    assert logits.shape == (B, T, V)
    assert bool(jnp.isfinite(logits).all())
    # TODO(synk): get_loss (cross_entropy with ignore_index=-1) is not part of forward();
    # only the forward pass (logits) is implemented here.
    print("KERNEL_OK")
</pallas_src>

<mosaic_0001>
module attributes {stable_mosaic.version = 11 : i64} {
  func.func @gpt_kernel(%arg0: i32, %arg1: memref<8x1xi32, #tpu.memory_space<vmem>>, %arg2: memref<128x32xf32, #tpu.memory_space<vmem>>, %arg3: memref<8x32xf32, #tpu.memory_space<vmem>>, %arg4: memref<2x1x32xf32, #tpu.memory_space<vmem>>, %arg5: memref<2x1x32xf32, #tpu.memory_space<vmem>>, %arg6: memref<2x32x96xf32, #tpu.memory_space<vmem>>, %arg7: memref<2x1x96xf32, #tpu.memory_space<vmem>>, %arg8: memref<2x32x32xf32, #tpu.memory_space<vmem>>, %arg9: memref<2x1x32xf32, #tpu.memory_space<vmem>>, %arg10: memref<2x1x32xf32, #tpu.memory_space<vmem>>, %arg11: memref<2x1x32xf32, #tpu.memory_space<vmem>>, %arg12: memref<2x32x128xf32, #tpu.memory_space<vmem>>, %arg13: memref<2x1x128xf32, #tpu.memory_space<vmem>>, %arg14: memref<2x128x32xf32, #tpu.memory_space<vmem>>, %arg15: memref<2x1x32xf32, #tpu.memory_space<vmem>>, %arg16: memref<1x32xf32, #tpu.memory_space<vmem>>, %arg17: memref<1x32xf32, #tpu.memory_space<vmem>>, %arg18: memref<8x128xf32, #tpu.memory_space<vmem>>) attributes {dimension_semantics = [#tpu.dimension_semantics<parallel>], iteration_bounds = array<i64: 2>, scalar_prefetch = 0 : i64, scratch_operands = 0 : i64, tpu.core_type = #tpu.core_type<tc>, window_params = [{transform_indices = @transform_0, window_bounds = array<i64: 8, 1>}, {pipeline_mode = #tpu.pipeline_mode<synchronous>, transform_indices = @transform_1, window_bounds = array<i64: 128, 32>}, {pipeline_mode = #tpu.pipeline_mode<synchronous>, transform_indices = @transform_2, window_bounds = array<i64: 8, 32>}, {pipeline_mode = #tpu.pipeline_mode<synchronous>, transform_indices = @transform_3, window_bounds = array<i64: 2, 1, 32>}, {pipeline_mode = #tpu.pipeline_mode<synchronous>, transform_indices = @transform_4, window_bounds = array<i64: 2, 1, 32>}, {pipeline_mode = #tpu.pipeline_mode<synchronous>, transform_indices = @transform_5, window_bounds = array<i64: 2, 32, 96>}, {pipeline_mode = #tpu.pipeline_mode<synchronous>, transform_indices = @transform_6, window_bounds = array<i64: 2, 1, 96>}, {pipeline_mode = #tpu.pipeline_mode<synchronous>, transform_indices = @transform_7, window_bounds = array<i64: 2, 32, 32>}, {pipeline_mode = #tpu.pipeline_mode<synchronous>, transform_indices = @transform_8, window_bounds = array<i64: 2, 1, 32>}, {pipeline_mode = #tpu.pipeline_mode<synchronous>, transform_indices = @transform_9, window_bounds = array<i64: 2, 1, 32>}, {pipeline_mode = #tpu.pipeline_mode<synchronous>, transform_indices = @transform_10, window_bounds = array<i64: 2, 1, 32>}, {pipeline_mode = #tpu.pipeline_mode<synchronous>, transform_indices = @transform_11, window_bounds = array<i64: 2, 32, 128>}, {pipeline_mode = #tpu.pipeline_mode<synchronous>, transform_indices = @transform_12, window_bounds = array<i64: 2, 1, 128>}, {pipeline_mode = #tpu.pipeline_mode<synchronous>, transform_indices = @transform_13, window_bounds = array<i64: 2, 128, 32>}, {pipeline_mode = #tpu.pipeline_mode<synchronous>, transform_indices = @transform_14, window_bounds = array<i64: 2, 1, 32>}, {pipeline_mode = #tpu.pipeline_mode<synchronous>, transform_indices = @transform_15, window_bounds = array<i64: 1, 32>}, {pipeline_mode = #tpu.pipeline_mode<synchronous>, transform_indices = @transform_16, window_bounds = array<i64: 1, 32>}, {transform_indices = @transform_17, window_bounds = array<i64: 8, 128>}]} {
    %c0 = arith.constant 0 : index
    %c0_0 = arith.constant 0 : index
    %0 = vector.load %arg1[%c0, %c0_0] : memref<8x1xi32, #tpu.memory_space<vmem>>, vector<8x1xi32>
    %c0_1 = arith.constant 0 : index
    %c0_2 = arith.constant 0 : index
    %1 = vector.load %arg2[%c0_1, %c0_2] : memref<128x32xf32, #tpu.memory_space<vmem>>, vector<128x32xf32>
    %2 = tpu.iota {dimensions = array<i32: 1>} : vector<8x128xi32>
    %3 = vector.broadcast %0 : vector<8x1xi32> to vector<8x128xi32>
    %4 = arith.cmpi eq, %2, %3 : vector<8x128xi32>
    %5 = arith.extui %4 : vector<8x128xi1> to vector<8x128xi32>
    %6 = arith.sitofp %5 : vector<8x128xi32> to vector<8x128xf32>
    %cst = arith.constant dense<0.000000e+00> : vector<8x32xf32>
    %7 = tpu.matmul %6, %1, %cst {dimension_numbers = #tpu.dot_dimension_numbers<[1], [0], [0], [1], [0, 0, 1, 1], [], []>} : vector<8x128xf32>, vector<128x32xf32>, vector<8x32xf32> -> vector<8x32xf32>
    %c0_3 = arith.constant 0 : index
    %c0_4 = arith.constant 0 : index
    %8 = vector.load %arg3[%c0_3, %c0_4] : memref<8x32xf32, #tpu.memory_space<vmem>>, vector<8x32xf32>
    %9 = arith.addf %7, %8 : vector<8x32xf32>
    %c0_5 = arith.constant 0 : index
    %c0_6 = arith.constant 0 : index
    %c0_7 = arith.constant 0 : index
    %10 = vector.load %arg4[%c0_5, %c0_6, %c0_7] : memref<2x1x32xf32, #tpu.memory_space<vmem>>, vector<1x1x32xf32>
    %11 = vector.shape_cast %10 : vector<1x1x32xf32> to vector<1x32xf32>
    %c0_8 = arith.constant 0 : index
    %c0_9 = arith.constant 0 : index
    %c0_10 = arith.constant 0 : index
    %12 = vector.load %arg5[%c0_8, %c0_9, %c0_10] : memref<2x1x32xf32, #tpu.memory_space<vmem>>, vector<1x1x32xf32>
    %13 = vector.shape_cast %12 : vector<1x1x32xf32> to vector<1x32xf32>
    %cst_11 = arith.constant dense<0.000000e+00> : vector<8xf32>
    %14 = vector.multi_reduction <add>, %9, %cst_11 [1] : vector<8x32xf32> to vector<8xf32>
    %15 = vector.shape_cast %14 : vector<8xf32> to vector<8x1xf32>
    %cst_12 = arith.constant 3.200000e+01 : f32
    %16 = vector.broadcast %cst_12 : f32 to vector<8x1xf32>
    %17 = arith.divf %15, %16 : vector<8x1xf32>
    %18 = vector.broadcast %17 : vector<8x1xf32> to vector<8x32xf32>
    %19 = arith.subf %9, %18 : vector<8x32xf32>
    %20 = arith.mulf %19, %19 : vector<8x32xf32>
    %cst_13 = arith.constant dense<0.000000e+00> : vector<8xf32>
    %21 = vector.multi_reduction <add>, %20, %cst_13 [1] : vector<8x32xf32> to vector<8xf32>
    %22 = vector.shape_cast %21 : vector<8xf32> to vector<8x1xf32>
    %cst_14 = arith.constant 3.200000e+01 : f32
    %23 = vector.broadcast %cst_14 : f32 to vector<8x1xf32>
    %24 = arith.divf %22, %23 : vector<8x1xf32>
    %25 = vector.broadcast %17 : vector<8x1xf32> to vector<8x32xf32>
    %26 = arith.subf %9, %25 : vector<8x32xf32>
    %cst_15 = arith.constant 9.99999974E-6 : f32
    %27 = vector.broadcast %cst_15 : f32 to vector<8x1xf32>
    %28 = arith.addf %24, %27 : vector<8x1xf32>
    %29 = math.rsqrt %28 : vector<8x1xf32>
    %30 = vector.broadcast %29 : vector<8x1xf32> to vector<8x32xf32>
    %31 = arith.mulf %26, %30 : vector<8x32xf32>
    %32 = vector.broadcast %11 : vector<1x32xf32> to vector<8x32xf32>
    %33 = arith.mulf %31, %32 : vector<8x32xf32>
    %34 = vector.broadcast %13 : vector<1x32xf32> to vector<8x32xf32>
    %35 = arith.addf %33, %34 : vector<8x32xf32>
    %c0_16 = arith.constant 0 : index
    %c0_17 = arith.constant 0 : index
    %c0_18 = arith.constant 0 : index
    %36 = vector.load %arg6[%c0_16, %c0_17, %c0_18] : memref<2x32x96xf32, #tpu.memory_space<vmem>>, vector<1x32x96xf32>
    %37 = vector.shape_cast %36 : vector<1x32x96xf32> to vector<32x96xf32>
    %cst_19 = arith.constant dense<0.000000e+00> : vector<8x96xf32>
    %38 = tpu.matmul %35, %37, %cst_19 {dimension_numbers = #tpu.dot_dimension_numbers<[1], [0], [0], [1], [0, 0, 1, 1], [], []>} : vector<8x32xf32>, vector<32x96xf32>, vector<8x96xf32> -> vector<8x96xf32>
    %c0_20 = arith.constant 0 : index
    %c0_21 = arith.constant 0 : index
    %c0_22 = arith.constant 0 : index
    %39 = vector.load %arg7[%c0_20, %c0_21, %c0_22] : memref<2x1x96xf32, #tpu.memory_space<vmem>>, vector<1x1x96xf32>
    %40 = vector.shape_cast %39 : vector<1x1x96xf32> to vector<1x96xf32>
    %41 = vector.broadcast %40 : vector<1x96xf32> to vector<8x96xf32>
    %42 = arith.addf %38, %41 : vector<8x96xf32>
    %43 = vector.extract_strided_slice %42 {offsets = [0, 0], sizes = [8, 16], strides = [1, 1]} : vector<8x96xf32> to vector<8x16xf32>
    %44 = vector.extract_strided_slice %42 {offsets = [0, 16], sizes = [8, 16], strides = [1, 1]} : vector<8x96xf32> to vector<8x16xf32>
    %45 = vector.shape_cast %43 : vector<8x16xf32> to vector<1x8x16xf32>
    %46 = vector.shape_cast %44 : vector<8x16xf32> to vector<1x8x16xf32>
    %47 = tpu.concatenate %45, %46 in 0 : vector<1x8x16xf32>, vector<1x8x16xf32> -> vector<2x8x16xf32>
    %48 = vector.extract_strided_slice %42 {offsets = [0, 32], sizes = [8, 16], strides = [1, 1]} : vector<8x96xf32> to vector<8x16xf32>
    %49 = vector.extract_strided_slice %42 {offsets = [0, 48], sizes = [8, 16], strides = [1, 1]} : vector<8x96xf32> to vector<8x16xf32>
    %50 = vector.shape_cast %48 : vector<8x16xf32> to vector<1x8x16xf32>
    %51 = vector.shape_cast %49 : vector<8x16xf32> to vector<1x8x16xf32>
    %52 = tpu.concatenate %50, %51 in 0 : vector<1x8x16xf32>, vector<1x8x16xf32> -> vector<2x8x16xf32>
    %53 = vector.extract_strided_slice %42 {offsets = [0, 64], sizes = [8, 16], strides = [1, 1]} : vector<8x96xf32> to vector<8x16xf32>
    %54 = vector.extract_strided_slice %42 {offsets = [0, 80], sizes = [8, 16], strides = [1, 1]} : vector<8x96xf32> to vector<8x16xf32>
    %55 = vector.shape_cast %53 : vector<8x16xf32> to vector<1x8x16xf32>
    %56 = vector.shape_cast %54 : vector<8x16xf32> to vector<1x8x16xf32>
    %57 = tpu.concatenate %55, %56 in 0 : vector<1x8x16xf32>, vector<1x8x16xf32> -> vector<2x8x16xf32>
    "tpu.trace_start"() <{level = 10 : i32, message = "hqd,hkd->hqk"}> : () -> ()
    %cst_23 = arith.constant dense<0.000000e+00> : vector<2x8x8xf32>
    %58 = tpu.matmul %47, %52, %cst_23 {dimension_numbers = #tpu.dot_dimension_numbers<[2], [2], [1], [1], [0, 0, 0, 1, 1, 1], [0], [0]>} : vector<2x8x16xf32>, vector<2x8x16xf32>, vector<2x8x8xf32> -> vector<2x8x8xf32>
    "tpu.trace_stop"() : () -> ()
    %cst_24 = arith.constant 2.500000e-01 : f32
    %59 = vector.broadcast %cst_24 : f32 to vector<2x8x8xf32>
    %60 = arith.mulf %58, %59 : vector<2x8x8xf32>
    %61 = tpu.iota {dimensions = array<i32: 1>} : vector<2x8x8xi32>
    %62 = tpu.iota {dimensions = array<i32: 2>} : vector<2x8x8xi32>
    %63 = arith.cmpi sle, %62, %61 : vector<2x8x8xi32>
    %cst_25 = arith.constant -1.000000e+30 : f32
    %64 = vector.broadcast %cst_25 : f32 to vector<2x8x8xf32>
    %65 = arith.select %63, %60, %64 : vector<2x8x8xi1>, vector<2x8x8xf32>
    %cst_26 = arith.constant dense<0xFF800000> : vector<2x8xf32>
    %66 = vector.multi_reduction <maximumf>, %65, %cst_26 [2] : vector<2x8x8xf32> to vector<2x8xf32>
    %67 = vector.shape_cast %66 : vector<2x8xf32> to vector<2x8x1xf32>
    %68 = vector.broadcast %67 : vector<2x8x1xf32> to vector<2x8x8xf32>
    %69 = arith.subf %65, %68 : vector<2x8x8xf32>
    %70 = math.exp %69 : vector<2x8x8xf32>
    %cst_27 = arith.constant dense<0.000000e+00> : vector<2x8xf32>
    %71 = vector.multi_reduction <add>, %70, %cst_27 [2] : vector<2x8x8xf32> to vector<2x8xf32>
    %72 = vector.shape_cast %71 : vector<2x8xf32> to vector<2x8x1xf32>
    %73 = tpu.reciprocal %72 {approx = true} : vector<2x8x1xf32> -> vector<2x8x1xf32>
    %74 = vector.broadcast %73 : vector<2x8x1xf32> to vector<2x8x8xf32>
    %75 = arith.mulf %70, %74 : vector<2x8x8xf32>
    "tpu.trace_start"() <{level = 10 : i32, message = "hqk,hkd->hqd"}> : () -> ()
    %cst_28 = arith.constant dense<0.000000e+00> : vector<2x8x16xf32>
    %76 = tpu.matmul %75, %57, %cst_28 {dimension_numbers = #tpu.dot_dimension_numbers<[2], [1], [1], [2], [0, 0, 0, 1, 1, 2], [0], [0]>} : vector<2x8x8xf32>, vector<2x8x16xf32>, vector<2x8x16xf32> -> vector<2x8x16xf32>
    "tpu.trace_stop"() : () -> ()
    %77 = vector.extract_strided_slice %76 {offsets = [0, 0, 0], sizes = [1, 8, 16], strides = [1, 1, 1]} : vector<2x8x16xf32> to vector<1x8x16xf32>
    %78 = vector.shape_cast %77 : vector<1x8x16xf32> to vector<8x16xf32>
    %79 = vector.extract_strided_slice %76 {offsets = [1, 0, 0], sizes = [1, 8, 16], strides = [1, 1, 1]} : vector<2x8x16xf32> to vector<1x8x16xf32>
    %80 = vector.shape_cast %79 : vector<1x8x16xf32> to vector<8x16xf32>
    %81 = tpu.concatenate %78, %80 in 1 : vector<8x16xf32>, vector<8x16xf32> -> vector<8x32xf32>
    %c0_29 = arith.constant 0 : index
    %c0_30 = arith.constant 0 : index
    %c0_31 = arith.constant 0 : index
    %82 = vector.load %arg8[%c0_29, %c0_30, %c0_31] : memref<2x32x32xf32, #tpu.memory_space<vmem>>, vector<1x32x32xf32>
    %83 = vector.shape_cast %82 : vector<1x32x32xf32> to vector<32x32xf32>
    %cst_32 = arith.constant dense<0.000000e+00> : vector<8x32xf32>
    %84 = tpu.matmul %81, %83, %cst_32 {dimension_numbers = #tpu.dot_dimension_numbers<[1], [0], [0], [1], [0, 0, 1, 1], [], []>} : vector<8x32xf32>, vector<32x32xf32>, vector<8x32xf32> -> vector<8x32xf32>
    %c0_33 = arith.constant 0 : index
    %c0_34 = arith.constant 0 : index
    %c0_35 = arith.constant 0 : index
    %85 = vector.load %arg9[%c0_33, %c0_34, %c0_35] : memref<2x1x32xf32, #tpu.memory_space<vmem>>, vector<1x1x32xf32>
    %86 = vector.shape_cast %85 : vector<1x1x32xf32> to vector<1x32xf32>
    %87 = vector.broadcast %86 : vector<1x32xf32> to vector<8x32xf32>
    %88 = arith.addf %84, %87 : vector<8x32xf32>
    %89 = arith.addf %9, %88 : vector<8x32xf32>
    %c0_36 = arith.constant 0 : index
    %c0_37 = arith.constant 0 : index
    %c0_38 = arith.constant 0 : index
    %90 = vector.load %arg10[%c0_36, %c0_37, %c0_38] : memref<2x1x32xf32, #tpu.memory_space<vmem>>, vector<1x1x32xf32>
    %91 = vector.shape_cast %90 : vector<1x1x32xf32> to vector<1x32xf32>
    %c0_39 = arith.constant 0 : index
    %c0_40 = arith.constant 0 : index
    %c0_41 = arith.constant 0 : index
    %92 = vector.load %arg11[%c0_39, %c0_40, %c0_41] : memref<2x1x32xf32, #tpu.memory_space<vmem>>, vector<1x1x32xf32>
    %93 = vector.shape_cast %92 : vector<1x1x32xf32> to vector<1x32xf32>
    %cst_42 = arith.constant dense<0.000000e+00> : vector<8xf32>
    %94 = vector.multi_reduction <add>, %89, %cst_42 [1] : vector<8x32xf32> to vector<8xf32>
    %95 = vector.shape_cast %94 : vector<8xf32> to vector<8x1xf32>
    %cst_43 = arith.constant 3.200000e+01 : f32
    %96 = vector.broadcast %cst_43 : f32 to vector<8x1xf32>
    %97 = arith.divf %95, %96 : vector<8x1xf32>
    %98 = vector.broadcast %97 : vector<8x1xf32> to vector<8x32xf32>
    %99 = arith.subf %89, %98 : vector<8x32xf32>
    %100 = arith.mulf %99, %99 : vector<8x32xf32>
    %cst_44 = arith.constant dense<0.000000e+00> : vector<8xf32>
    %101 = vector.multi_reduction <add>, %100, %cst_44 [1] : vector<8x32xf32> to vector<8xf32>
    %102 = vector.shape_cast %101 : vector<8xf32> to vector<8x1xf32>
    %cst_45 = arith.constant 3.200000e+01 : f32
    %103 = vector.broadcast %cst_45 : f32 to vector<8x1xf32>
    %104 = arith.divf %102, %103 : vector<8x1xf32>
    %105 = vector.broadcast %97 : vector<8x1xf32> to vector<8x32xf32>
    %106 = arith.subf %89, %105 : vector<8x32xf32>
    %cst_46 = arith.constant 9.99999974E-6 : f32
    %107 = vector.broadcast %cst_46 : f32 to vector<8x1xf32>
    %108 = arith.addf %104, %107 : vector<8x1xf32>
    %109 = math.rsqrt %108 : vector<8x1xf32>
    %110 = vector.broadcast %109 : vector<8x1xf32> to vector<8x32xf32>
    %111 = arith.mulf %106, %110 : vector<8x32xf32>
    %112 = vector.broadcast %91 : vector<1x32xf32> to vector<8x32xf32>
    %113 = arith.mulf %111, %112 : vector<8x32xf32>
    %114 = vector.broadcast %93 : vector<1x32xf32> to vector<8x32xf32>
    %115 = arith.addf %113, %114 : vector<8x32xf32>
    %c0_47 = arith.constant 0 : index
    %c0_48 = arith.constant 0 : index
    %c0_49 = arith.constant 0 : index
    %116 = vector.load %arg12[%c0_47, %c0_48, %c0_49] : memref<2x32x128xf32, #tpu.memory_space<vmem>>, vector<1x32x128xf32>
    %117 = vector.shape_cast %116 : vector<1x32x128xf32> to vector<32x128xf32>
    %cst_50 = arith.constant dense<0.000000e+00> : vector<8x128xf32>
    %118 = tpu.matmul %115, %117, %cst_50 {dimension_numbers = #tpu.dot_dimension_numbers<[1], [0], [0], [1], [0, 0, 1, 1], [], []>} : vector<8x32xf32>, vector<32x128xf32>, vector<8x128xf32> -> vector<8x128xf32>
    %c0_51 = arith.constant 0 : index
    %c0_52 = arith.constant 0 : index
    %c0_53 = arith.constant 0 : index
    %119 = vector.load %arg13[%c0_51, %c0_52, %c0_53] : memref<2x1x128xf32, #tpu.memory_space<vmem>>, vector<1x1x128xf32>
    %120 = vector.shape_cast %119 : vector<1x1x128xf32> to vector<1x128xf32>
    %121 = vector.broadcast %120 : vector<1x128xf32> to vector<8x128xf32>
    %122 = arith.addf %118, %121 : vector<8x128xf32>
    %cst_54 = arith.constant 5.000000e-01 : f32
    %123 = vector.broadcast %cst_54 : f32 to vector<8x128xf32>
    %124 = arith.mulf %123, %122 : vector<8x128xf32>
    %cst_55 = arith.constant 4.471500e-02 : f32
    %125 = vector.broadcast %cst_55 : f32 to vector<8x128xf32>
    %126 = arith.mulf %125, %122 : vector<8x128xf32>
    %127 = arith.mulf %126, %122 : vector<8x128xf32>
    %128 = arith.mulf %127, %122 : vector<8x128xf32>
    %129 = arith.addf %122, %128 : vector<8x128xf32>
    %cst_56 = arith.constant 0.797884583 : f32
    %130 = vector.broadcast %cst_56 : f32 to vector<8x128xf32>
    %131 = arith.mulf %130, %129 : vector<8x128xf32>
    %132 = math.tanh %131 : vector<8x128xf32>
    %cst_57 = arith.constant 1.000000e+00 : f32
    %133 = vector.broadcast %cst_57 : f32 to vector<8x128xf32>
    %134 = arith.addf %133, %132 : vector<8x128xf32>
    %135 = arith.mulf %124, %134 : vector<8x128xf32>
    %c0_58 = arith.constant 0 : index
    %c0_59 = arith.constant 0 : index
    %c0_60 = arith.constant 0 : index
    %136 = vector.load %arg14[%c0_58, %c0_59, %c0_60] : memref<2x128x32xf32, #tpu.memory_space<vmem>>, vector<1x128x32xf32>
    %137 = vector.shape_cast %136 : vector<1x128x32xf32> to vector<128x32xf32>
    %cst_61 = arith.constant dense<0.000000e+00> : vector<8x32xf32>
    %138 = tpu.matmul %135, %137, %cst_61 {dimension_numbers = #tpu.dot_dimension_numbers<[1], [0], [0], [1], [0, 0, 1, 1], [], []>} : vector<8x128xf32>, vector<128x32xf32>, vector<8x32xf32> -> vector<8x32xf32>
    %c0_62 = arith.constant 0 : index
    %c0_63 = arith.constant 0 : index
    %c0_64 = arith.constant 0 : index
    %139 = vector.load %arg15[%c0_62, %c0_63, %c0_64] : memref<2x1x32xf32, #tpu.memory_space<vmem>>, vector<1x1x32xf32>
    %140 = vector.shape_cast %139 : vector<1x1x32xf32> to vector<1x32xf32>
    %141 = vector.broadcast %140 : vector<1x32xf32> to vector<8x32xf32>
    %142 = arith.addf %138, %141 : vector<8x32xf32>
    %143 = arith.addf %89, %142 : vector<8x32xf32>
    %c1 = arith.constant 1 : index
    %c0_65 = arith.constant 0 : index
    %c0_66 = arith.constant 0 : index
    %144 = vector.load %arg4[%c1, %c0_65, %c0_66] : memref<2x1x32xf32, #tpu.memory_space<vmem>>, vector<1x1x32xf32>
    %145 = vector.shape_cast %144 : vector<1x1x32xf32> to vector<1x32xf32>
    %c1_67 = arith.constant 1 : index
    %c0_68 = arith.constant 0 : index
    %c0_69 = arith.constant 0 : index
    %146 = vector.load %arg5[%c1_67, %c0_68, %c0_69] : memref<2x1x32xf32, #tpu.memory_space<vmem>>, vector<1x1x32xf32>
    %147 = vector.shape_cast %146 : vector<1x1x32xf32> to vector<1x32xf32>
    %cst_70 = arith.constant dense<0.000000e+00> : vector<8xf32>
    %148 = vector.multi_reduction <add>, %143, %cst_70 [1] : vector<8x32xf32> to vector<8xf32>
    %149 = vector.shape_cast %148 : vector<8xf32> to vector<8x1xf32>
    %cst_71 = arith.constant 3.200000e+01 : f32
    %150 = vector.broadcast %cst_71 : f32 to vector<8x1xf32>
    %151 = arith.divf %149, %150 : vector<8x1xf32>
    %152 = vector.broadcast %151 : vector<8x1xf32> to vector<8x32xf32>
    %153 = arith.subf %143, %152 : vector<8x32xf32>
    %154 = arith.mulf %153, %153 : vector<8x32xf32>
    %cst_72 = arith.constant dense<0.000000e+00> : vector<8xf32>
    %155 = vector.multi_reduction <add>, %154, %cst_72 [1] : vector<8x32xf32> to vector<8xf32>
    %156 = vector.shape_cast %155 : vector<8xf32> to vector<8x1xf32>
    %cst_73 = arith.constant 3.200000e+01 : f32
    %157 = vector.broadcast %cst_73 : f32 to vector<8x1xf32>
    %158 = arith.divf %156, %157 : vector<8x1xf32>
    %159 = vector.broadcast %151 : vector<8x1xf32> to vector<8x32xf32>
    %160 = arith.subf %143, %159 : vector<8x32xf32>
    %cst_74 = arith.constant 9.99999974E-6 : f32
    %161 = vector.broadcast %cst_74 : f32 to vector<8x1xf32>
    %162 = arith.addf %158, %161 : vector<8x1xf32>
    %163 = math.rsqrt %162 : vector<8x1xf32>
    %164 = vector.broadcast %163 : vector<8x1xf32> to vector<8x32xf32>
    %165 = arith.mulf %160, %164 : vector<8x32xf32>
    %166 = vector.broadcast %145 : vector<1x32xf32> to vector<8x32xf32>
    %167 = arith.mulf %165, %166 : vector<8x32xf32>
    %168 = vector.broadcast %147 : vector<1x32xf32> to vector<8x32xf32>
    %169 = arith.addf %167, %168 : vector<8x32xf32>
    %c1_75 = arith.constant 1 : index
    %c0_76 = arith.constant 0 : index
    %c0_77 = arith.constant 0 : index
    %170 = vector.load %arg6[%c1_75, %c0_76, %c0_77] : memref<2x32x96xf32, #tpu.memory_space<vmem>>, vector<1x32x96xf32>
    %171 = vector.shape_cast %170 : vector<1x32x96xf32> to vector<32x96xf32>
    %cst_78 = arith.constant dense<0.000000e+00> : vector<8x96xf32>
    %172 = tpu.matmul %169, %171, %cst_78 {dimension_numbers = #tpu.dot_dimension_numbers<[1], [0], [0], [1], [0, 0, 1, 1], [], []>} : vector<8x32xf32>, vector<32x96xf32>, vector<8x96xf32> -> vector<8x96xf32>
    %c1_79 = arith.constant 1 : index
    %c0_80 = arith.constant 0 : index
    %c0_81 = arith.constant 0 : index
    %173 = vector.load %arg7[%c1_79, %c0_80, %c0_81] : memref<2x1x96xf32, #tpu.memory_space<vmem>>, vector<1x1x96xf32>
    %174 = vector.shape_cast %173 : vector<1x1x96xf32> to vector<1x96xf32>
    %175 = vector.broadcast %174 : vector<1x96xf32> to vector<8x96xf32>
    %176 = arith.addf %172, %175 : vector<8x96xf32>
    %177 = vector.extract_strided_slice %176 {offsets = [0, 0], sizes = [8, 16], strides = [1, 1]} : vector<8x96xf32> to vector<8x16xf32>
    %178 = vector.extract_strided_slice %176 {offsets = [0, 16], sizes = [8, 16], strides = [1, 1]} : vector<8x96xf32> to vector<8x16xf32>
    %179 = vector.shape_cast %177 : vector<8x16xf32> to vector<1x8x16xf32>
    %180 = vector.shape_cast %178 : vector<8x16xf32> to vector<1x8x16xf32>
    %181 = tpu.concatenate %179, %180 in 0 : vector<1x8x16xf32>, vector<1x8x16xf32> -> vector<2x8x16xf32>
    %182 = vector.extract_strided_slice %176 {offsets = [0, 32], sizes = [8, 16], strides = [1, 1]} : vector<8x96xf32> to vector<8x16xf32>
    %183 = vector.extract_strided_slice %176 {offsets = [0, 48], sizes = [8, 16], strides = [1, 1]} : vector<8x96xf32> to vector<8x16xf32>
    %184 = vector.shape_cast %182 : vector<8x16xf32> to vector<1x8x16xf32>
    %185 = vector.shape_cast %183 : vector<8x16xf32> to vector<1x8x16xf32>
    %186 = tpu.concatenate %184, %185 in 0 : vector<1x8x16xf32>, vector<1x8x16xf32> -> vector<2x8x16xf32>
    %187 = vector.extract_strided_slice %176 {offsets = [0, 64], sizes = [8, 16], strides = [1, 1]} : vector<8x96xf32> to vector<8x16xf32>
    %188 = vector.extract_strided_slice %176 {offsets = [0, 80], sizes = [8, 16], strides = [1, 1]} : vector<8x96xf32> to vector<8x16xf32>
    %189 = vector.shape_cast %187 : vector<8x16xf32> to vector<1x8x16xf32>
    %190 = vector.shape_cast %188 : vector<8x16xf32> to vector<1x8x16xf32>
    %191 = tpu.concatenate %189, %190 in 0 : vector<1x8x16xf32>, vector<1x8x16xf32> -> vector<2x8x16xf32>
    "tpu.trace_start"() <{level = 10 : i32, message = "hqd,hkd->hqk"}> : () -> ()
    %cst_82 = arith.constant dense<0.000000e+00> : vector<2x8x8xf32>
    %192 = tpu.matmul %181, %186, %cst_82 {dimension_numbers = #tpu.dot_dimension_numbers<[2], [2], [1], [1], [0, 0, 0, 1, 1, 1], [0], [0]>} : vector<2x8x16xf32>, vector<2x8x16xf32>, vector<2x8x8xf32> -> vector<2x8x8xf32>
    "tpu.trace_stop"() : () -> ()
    %cst_83 = arith.constant 2.500000e-01 : f32
    %193 = vector.broadcast %cst_83 : f32 to vector<2x8x8xf32>
    %194 = arith.mulf %192, %193 : vector<2x8x8xf32>
    %195 = tpu.iota {dimensions = array<i32: 1>} : vector<2x8x8xi32>
    %196 = tpu.iota {dimensions = array<i32: 2>} : vector<2x8x8xi32>
    %197 = arith.cmpi sle, %196, %195 : vector<2x8x8xi32>
    %cst_84 = arith.constant -1.000000e+30 : f32
    %198 = vector.broadcast %cst_84 : f32 to vector<2x8x8xf32>
    %199 = arith.select %197, %194, %198 : vector<2x8x8xi1>, vector<2x8x8xf32>
    %cst_85 = arith.constant dense<0xFF800000> : vector<2x8xf32>
    %200 = vector.multi_reduction <maximumf>, %199, %cst_85 [2] : vector<2x8x8xf32> to vector<2x8xf32>
    %201 = vector.shape_cast %200 : vector<2x8xf32> to vector<2x8x1xf32>
    %202 = vector.broadcast %201 : vector<2x8x1xf32> to vector<2x8x8xf32>
    %203 = arith.subf %199, %202 : vector<2x8x8xf32>
    %204 = math.exp %203 : vector<2x8x8xf32>
    %cst_86 = arith.constant dense<0.000000e+00> : vector<2x8xf32>
    %205 = vector.multi_reduction <add>, %204, %cst_86 [2] : vector<2x8x8xf32> to vector<2x8xf32>
    %206 = vector.shape_cast %205 : vector<2x8xf32> to vector<2x8x1xf32>
    %207 = tpu.reciprocal %206 {approx = true} : vector<2x8x1xf32> -> vector<2x8x1xf32>
    %208 = vector.broadcast %207 : vector<2x8x1xf32> to vector<2x8x8xf32>
    %209 = arith.mulf %204, %208 : vector<2x8x8xf32>
    "tpu.trace_start"() <{level = 10 : i32, message = "hqk,hkd->hqd"}> : () -> ()
    %cst_87 = arith.constant dense<0.000000e+00> : vector<2x8x16xf32>
    %210 = tpu.matmul %209, %191, %cst_87 {dimension_numbers = #tpu.dot_dimension_numbers<[2], [1], [1], [2], [0, 0, 0, 1, 1, 2], [0], [0]>} : vector<2x8x8xf32>, vector<2x8x16xf32>, vector<2x8x16xf32> -> vector<2x8x16xf32>
    "tpu.trace_stop"() : () -> ()
    %211 = vector.extract_strided_slice %210 {offsets = [0, 0, 0], sizes = [1, 8, 16], strides = [1, 1, 1]} : vector<2x8x16xf32> to vector<1x8x16xf32>
    %212 = vector.shape_cast %211 : vector<1x8x16xf32> to vector<8x16xf32>
    %213 = vector.extract_strided_slice %210 {offsets = [1, 0, 0], sizes = [1, 8, 16], strides = [1, 1, 1]} : vector<2x8x16xf32> to vector<1x8x16xf32>
    %214 = vector.shape_cast %213 : vector<1x8x16xf32> to vector<8x16xf32>
    %215 = tpu.concatenate %212, %214 in 1 : vector<8x16xf32>, vector<8x16xf32> -> vector<8x32xf32>
    %c1_88 = arith.constant 1 : index
    %c0_89 = arith.constant 0 : index
    %c0_90 = arith.constant 0 : index
    %216 = vector.load %arg8[%c1_88, %c0_89, %c0_90] : memref<2x32x32xf32, #tpu.memory_space<vmem>>, vector<1x32x32xf32>
    %217 = vector.shape_cast %216 : vector<1x32x32xf32> to vector<32x32xf32>
    %cst_91 = arith.constant dense<0.000000e+00> : vector<8x32xf32>
    %218 = tpu.matmul %215, %217, %cst_91 {dimension_numbers = #tpu.dot_dimension_numbers<[1], [0], [0], [1], [0, 0, 1, 1], [], []>} : vector<8x32xf32>, vector<32x32xf32>, vector<8x32xf32> -> vector<8x32xf32>
    %c1_92 = arith.constant 1 : index
    %c0_93 = arith.constant 0 : index
    %c0_94 = arith.constant 0 : index
    %219 = vector.load %arg9[%c1_92, %c0_93, %c0_94] : memref<2x1x32xf32, #tpu.memory_space<vmem>>, vector<1x1x32xf32>
    %220 = vector.shape_cast %219 : vector<1x1x32xf32> to vector<1x32xf32>
    %221 = vector.broadcast %220 : vector<1x32xf32> to vector<8x32xf32>
    %222 = arith.addf %218, %221 : vector<8x32xf32>
    %223 = arith.addf %143, %222 : vector<8x32xf32>
    %c1_95 = arith.constant 1 : index
    %c0_96 = arith.constant 0 : index
    %c0_97 = arith.constant 0 : index
    %224 = vector.load %arg10[%c1_95, %c0_96, %c0_97] : memref<2x1x32xf32, #tpu.memory_space<vmem>>, vector<1x1x32xf32>
    %225 = vector.shape_cast %224 : vector<1x1x32xf32> to vector<1x32xf32>
    %c1_98 = arith.constant 1 : index
    %c0_99 = arith.constant 0 : index
    %c0_100 = arith.constant 0 : index
    %226 = vector.load %arg11[%c1_98, %c0_99, %c0_100] : memref<2x1x32xf32, #tpu.memory_space<vmem>>, vector<1x1x32xf32>
    %227 = vector.shape_cast %226 : vector<1x1x32xf32> to vector<1x32xf32>
    %cst_101 = arith.constant dense<0.000000e+00> : vector<8xf32>
    %228 = vector.multi_reduction <add>, %223, %cst_101 [1] : vector<8x32xf32> to vector<8xf32>
    %229 = vector.shape_cast %228 : vector<8xf32> to vector<8x1xf32>
    %cst_102 = arith.constant 3.200000e+01 : f32
    %230 = vector.broadcast %cst_102 : f32 to vector<8x1xf32>
    %231 = arith.divf %229, %230 : vector<8x1xf32>
    %232 = vector.broadcast %231 : vector<8x1xf32> to vector<8x32xf32>
    %233 = arith.subf %223, %232 : vector<8x32xf32>
    %234 = arith.mulf %233, %233 : vector<8x32xf32>
    %cst_103 = arith.constant dense<0.000000e+00> : vector<8xf32>
    %235 = vector.multi_reduction <add>, %234, %cst_103 [1] : vector<8x32xf32> to vector<8xf32>
    %236 = vector.shape_cast %235 : vector<8xf32> to vector<8x1xf32>
    %cst_104 = arith.constant 3.200000e+01 : f32
    %237 = vector.broadcast %cst_104 : f32 to vector<8x1xf32>
    %238 = arith.divf %236, %237 : vector<8x1xf32>
    %239 = vector.broadcast %231 : vector<8x1xf32> to vector<8x32xf32>
    %240 = arith.subf %223, %239 : vector<8x32xf32>
    %cst_105 = arith.constant 9.99999974E-6 : f32
    %241 = vector.broadcast %cst_105 : f32 to vector<8x1xf32>
    %242 = arith.addf %238, %241 : vector<8x1xf32>
    %243 = math.rsqrt %242 : vector<8x1xf32>
    %244 = vector.broadcast %243 : vector<8x1xf32> to vector<8x32xf32>
    %245 = arith.mulf %240, %244 : vector<8x32xf32>
    %246 = vector.broadcast %225 : vector<1x32xf32> to vector<8x32xf32>
    %247 = arith.mulf %245, %246 : vector<8x32xf32>
    %248 = vector.broadcast %227 : vector<1x32xf32> to vector<8x32xf32>
    %249 = arith.addf %247, %248 : vector<8x32xf32>
    %c1_106 = arith.constant 1 : index
    %c0_107 = arith.constant 0 : index
    %c0_108 = arith.constant 0 : index
    %250 = vector.load %arg12[%c1_106, %c0_107, %c0_108] : memref<2x32x128xf32, #tpu.memory_space<vmem>>, vector<1x32x128xf32>
    %251 = vector.shape_cast %250 : vector<1x32x128xf32> to vector<32x128xf32>
    %cst_109 = arith.constant dense<0.000000e+00> : vector<8x128xf32>
    %252 = tpu.matmul %249, %251, %cst_109 {dimension_numbers = #tpu.dot_dimension_numbers<[1], [0], [0], [1], [0, 0, 1, 1], [], []>} : vector<8x32xf32>, vector<32x128xf32>, vector<8x128xf32> -> vector<8x128xf32>
    %c1_110 = arith.constant 1 : index
    %c0_111 = arith.constant 0 : index
    %c0_112 = arith.constant 0 : index
    %253 = vector.load %arg13[%c1_110, %c0_111, %c0_112] : memref<2x1x128xf32, #tpu.memory_space<vmem>>, vector<1x1x128xf32>
    %254 = vector.shape_cast %253 : vector<1x1x128xf32> to vector<1x128xf32>
    %255 = vector.broadcast %254 : vector<1x128xf32> to vector<8x128xf32>
    %256 = arith.addf %252, %255 : vector<8x128xf32>
    %cst_113 = arith.constant 5.000000e-01 : f32
    %257 = vector.broadcast %cst_113 : f32 to vector<8x128xf32>
    %258 = arith.mulf %257, %256 : vector<8x128xf32>
    %cst_114 = arith.constant 4.471500e-02 : f32
    %259 = vector.broadcast %cst_114 : f32 to vector<8x128xf32>
    %260 = arith.mulf %259, %256 : vector<8x128xf32>
    %261 = arith.mulf %260, %256 : vector<8x128xf32>
    %262 = arith.mulf %261, %256 : vector<8x128xf32>
    %263 = arith.addf %256, %262 : vector<8x128xf32>
    %cst_115 = arith.constant 0.797884583 : f32
    %264 = vector.broadcast %cst_115 : f32 to vector<8x128xf32>
    %265 = arith.mulf %264, %263 : vector<8x128xf32>
    %266 = math.tanh %265 : vector<8x128xf32>
    %cst_116 = arith.constant 1.000000e+00 : f32
    %267 = vector.broadcast %cst_116 : f32 to vector<8x128xf32>
    %268 = arith.addf %267, %266 : vector<8x128xf32>
    %269 = arith.mulf %258, %268 : vector<8x128xf32>
    %c1_117 = arith.constant 1 : index
    %c0_118 = arith.constant 0 : index
    %c0_119 = arith.constant 0 : index
    %270 = vector.load %arg14[%c1_117, %c0_118, %c0_119] : memref<2x128x32xf32, #tpu.memory_space<vmem>>, vector<1x128x32xf32>
    %271 = vector.shape_cast %270 : vector<1x128x32xf32> to vector<128x32xf32>
    %cst_120 = arith.constant dense<0.000000e+00> : vector<8x32xf32>
    %272 = tpu.matmul %269, %271, %cst_120 {dimension_numbers = #tpu.dot_dimension_numbers<[1], [0], [0], [1], [0, 0, 1, 1], [], []>} : vector<8x128xf32>, vector<128x32xf32>, vector<8x32xf32> -> vector<8x32xf32>
    %c1_121 = arith.constant 1 : index
    %c0_122 = arith.constant 0 : index
    %c0_123 = arith.constant 0 : index
    %273 = vector.load %arg15[%c1_121, %c0_122, %c0_123] : memref<2x1x32xf32, #tpu.memory_space<vmem>>, vector<1x1x32xf32>
    %274 = vector.shape_cast %273 : vector<1x1x32xf32> to vector<1x32xf32>
    %275 = vector.broadcast %274 : vector<1x32xf32> to vector<8x32xf32>
    %276 = arith.addf %272, %275 : vector<8x32xf32>
    %277 = arith.addf %223, %276 : vector<8x32xf32>
    %c0_124 = arith.constant 0 : index
    %c0_125 = arith.constant 0 : index
    %278 = vector.load %arg16[%c0_124, %c0_125] : memref<1x32xf32, #tpu.memory_space<vmem>>, vector<1x32xf32>
    %c0_126 = arith.constant 0 : index
    %c0_127 = arith.constant 0 : index
    %279 = vector.load %arg17[%c0_126, %c0_127] : memref<1x32xf32, #tpu.memory_space<vmem>>, vector<1x32xf32>
    %cst_128 = arith.constant dense<0.000000e+00> : vector<8xf32>
    %280 = vector.multi_reduction <add>, %277, %cst_128 [1] : vector<8x32xf32> to vector<8xf32>
    %281 = vector.shape_cast %280 : vector<8xf32> to vector<8x1xf32>
    %cst_129 = arith.constant 3.200000e+01 : f32
    %282 = vector.broadcast %cst_129 : f32 to vector<8x1xf32>
    %283 = arith.divf %281, %282 : vector<8x1xf32>
    %284 = vector.broadcast %283 : vector<8x1xf32> to vector<8x32xf32>
    %285 = arith.subf %277, %284 : vector<8x32xf32>
    %286 = arith.mulf %285, %285 : vector<8x32xf32>
    %cst_130 = arith.constant dense<0.000000e+00> : vector<8xf32>
    %287 = vector.multi_reduction <add>, %286, %cst_130 [1] : vector<8x32xf32> to vector<8xf32>
    %288 = vector.shape_cast %287 : vector<8xf32> to vector<8x1xf32>
    %cst_131 = arith.constant 3.200000e+01 : f32
    %289 = vector.broadcast %cst_131 : f32 to vector<8x1xf32>
    %290 = arith.divf %288, %289 : vector<8x1xf32>
    %291 = vector.broadcast %283 : vector<8x1xf32> to vector<8x32xf32>
    %292 = arith.subf %277, %291 : vector<8x32xf32>
    %cst_132 = arith.constant 9.99999974E-6 : f32
    %293 = vector.broadcast %cst_132 : f32 to vector<8x1xf32>
    %294 = arith.addf %290, %293 : vector<8x1xf32>
    %295 = math.rsqrt %294 : vector<8x1xf32>
    %296 = vector.broadcast %295 : vector<8x1xf32> to vector<8x32xf32>
    %297 = arith.mulf %292, %296 : vector<8x32xf32>
    %298 = vector.broadcast %278 : vector<1x32xf32> to vector<8x32xf32>
    %299 = arith.mulf %297, %298 : vector<8x32xf32>
    %300 = vector.broadcast %279 : vector<1x32xf32> to vector<8x32xf32>
    %301 = arith.addf %299, %300 : vector<8x32xf32>
    %cst_133 = arith.constant dense<0.000000e+00> : vector<8x128xf32>
    %302 = tpu.matmul %301, %1, %cst_133 {dimension_numbers = #tpu.dot_dimension_numbers<[1], [1], [0], [0], [0, 0, 1, 0], [], []>} : vector<8x32xf32>, vector<128x32xf32>, vector<8x128xf32> -> vector<8x128xf32>
    %c0_134 = arith.constant 0 : index
    %c0_135 = arith.constant 0 : index
    %303 = vector.load %arg18[%c0_134, %c0_135] : memref<8x128xf32, #tpu.memory_space<vmem>>, vector<8x128xf32>
    tpu.vector_store %arg18[%c0_134, %c0_135], %302 {strides = array<i32>} : memref<8x128xf32, #tpu.memory_space<vmem>>, vector<8x128xf32>,
    return
  }
  func.func @transform_0(%arg0: i32) -> (i32, i32) {
    %c0_i32 = arith.constant 0 : i32
    %c0_i32_0 = arith.constant 0 : i32
    return %arg0, %c0_i32 : i32, i32
  }
  func.func @transform_1(%arg0: i32) -> (i32, i32) {
    %c0_i32 = arith.constant 0 : i32
    %c0_i32_0 = arith.constant 0 : i32
    %c0_i32_1 = arith.constant 0 : i32
    return %c0_i32, %c0_i32_0 : i32, i32
  }
  func.func @transform_2(%arg0: i32) -> (i32, i32) {
    %c0_i32 = arith.constant 0 : i32
    %c0_i32_0 = arith.constant 0 : i32
    %c0_i32_1 = arith.constant 0 : i32
    return %c0_i32, %c0_i32_0 : i32, i32
  }
  func.func @transform_3(%arg0: i32) -> (i32, i32, i32) {
    %c0_i32 = arith.constant 0 : i32
    %c0_i32_0 = arith.constant 0 : i32
    %c0_i32_1 = arith.constant 0 : i32
    %c0_i32_2 = arith.constant 0 : i32
    return %c0_i32, %c0_i32_0, %c0_i32_1 : i32, i32, i32
  }
  func.func @transform_4(%arg0: i32) -> (i32, i32, i32) {
    %c0_i32 = arith.constant 0 : i32
    %c0_i32_0 = arith.constant 0 : i32
    %c0_i32_1 = arith.constant 0 : i32
    %c0_i32_2 = arith.constant 0 : i32
    return %c0_i32, %c0_i32_0, %c0_i32_1 : i32, i32, i32
  }
  func.func @transform_5(%arg0: i32) -> (i32, i32, i32) {
    %c0_i32 = arith.constant 0 : i32
    %c0_i32_0 = arith.constant 0 : i32
    %c0_i32_1 = arith.constant 0 : i32
    %c0_i32_2 = arith.constant 0 : i32
    return %c0_i32, %c0_i32_0, %c0_i32_1 : i32, i32, i32
  }
  func.func @transform_6(%arg0: i32) -> (i32, i32, i32) {
    %c0_i32 = arith.constant 0 : i32
    %c0_i32_0 = arith.constant 0 : i32
    %c0_i32_1 = arith.constant 0 : i32
    %c0_i32_2 = arith.constant 0 : i32
    return %c0_i32, %c0_i32_0, %c0_i32_1 : i32, i32, i32
  }
  func.func @transform_7(%arg0: i32) -> (i32, i32, i32) {
    %c0_i32 = arith.constant 0 : i32
    %c0_i32_0 = arith.constant 0 : i32
    %c0_i32_1 = arith.constant 0 : i32
    %c0_i32_2 = arith.constant 0 : i32
    return %c0_i32, %c0_i32_0, %c0_i32_1 : i32, i32, i32
  }
  func.func @transform_8(%arg0: i32) -> (i32, i32, i32) {
    %c0_i32 = arith.constant 0 : i32
    %c0_i32_0 = arith.constant 0 : i32
    %c0_i32_1 = arith.constant 0 : i32
    %c0_i32_2 = arith.constant 0 : i32
    return %c0_i32, %c0_i32_0, %c0_i32_1 : i32, i32, i32
  }
  func.func @transform_9(%arg0: i32) -> (i32, i32, i32) {
    %c0_i32 = arith.constant 0 : i32
    %c0_i32_0 = arith.constant 0 : i32
    %c0_i32_1 = arith.constant 0 : i32
    %c0_i32_2 = arith.constant 0 : i32
    return %c0_i32, %c0_i32_0, %c0_i32_1 : i32, i32, i32
  }
  func.func @transform_10(%arg0: i32) -> (i32, i32, i32) {
    %c0_i32 = arith.constant 0 : i32
    %c0_i32_0 = arith.constant 0 : i32
    %c0_i32_1 = arith.constant 0 : i32
    %c0_i32_2 = arith.constant 0 : i32
    return %c0_i32, %c0_i32_0, %c0_i32_1 : i32, i32, i32
  }
  func.func @transform_11(%arg0: i32) -> (i32, i32, i32) {
    %c0_i32 = arith.constant 0 : i32
    %c0_i32_0 = arith.constant 0 : i32
    %c0_i32_1 = arith.constant 0 : i32
    %c0_i32_2 = arith.constant 0 : i32
    return %c0_i32, %c0_i32_0, %c0_i32_1 : i32, i32, i32
  }
  func.func @transform_12(%arg0: i32) -> (i32, i32, i32) {
    %c0_i32 = arith.constant 0 : i32
    %c0_i32_0 = arith.constant 0 : i32
    %c0_i32_1 = arith.constant 0 : i32
    %c0_i32_2 = arith.constant 0 : i32
    return %c0_i32, %c0_i32_0, %c0_i32_1 : i32, i32, i32
  }
  func.func @transform_13(%arg0: i32) -> (i32, i32, i32) {
    %c0_i32 = arith.constant 0 : i32
    %c0_i32_0 = arith.constant 0 : i32
    %c0_i32_1 = arith.constant 0 : i32
    %c0_i32_2 = arith.constant 0 : i32
    return %c0_i32, %c0_i32_0, %c0_i32_1 : i32, i32, i32
  }
  func.func @transform_14(%arg0: i32) -> (i32, i32, i32) {
    %c0_i32 = arith.constant 0 : i32
    %c0_i32_0 = arith.constant 0 : i32
    %c0_i32_1 = arith.constant 0 : i32
    %c0_i32_2 = arith.constant 0 : i32
    return %c0_i32, %c0_i32_0, %c0_i32_1 : i32, i32, i32
  }
  func.func @transform_15(%arg0: i32) -> (i32, i32) {
    %c0_i32 = arith.constant 0 : i32
    %c0_i32_0 = arith.constant 0 : i32
    %c0_i32_1 = arith.constant 0 : i32
    return %c0_i32, %c0_i32_0 : i32, i32
  }
  func.func @transform_16(%arg0: i32) -> (i32, i32) {
    %c0_i32 = arith.constant 0 : i32
    %c0_i32_0 = arith.constant 0 : i32
    %c0_i32_1 = arith.constant 0 : i32
    return %c0_i32, %c0_i32_0 : i32, i32
  }
  func.func @transform_17(%arg0: i32) -> (i32, i32) {
    %c0_i32 = arith.constant 0 : i32
    %c0_i32_0 = arith.constant 0 : i32
    return %arg0, %c0_i32 : i32, i32
  }
}

</mosaic_0001>

<llo_original>
// kernel: gpt_forward.1
$region0: #{gpt_forward.1}
  #allocation0 [shape = 'u32[]', space=smem, size = 0x4, offset = 0x4, fixed_abs, tag = 'smem constant byte address 0x4 - core index']
  #allocation1 [shape = 'u32[144,128]{1,0:T(1,128)}', space=vmem, size = 0x12000, scoped, tag = 'internal scratch']
  %s0 = inlined_call_operand.vmem [shape: s32[16,1], index: 0, kind: input, shape index: {}]
  %s1 = inlined_call_operand.vmem [shape: f32[128,32], index: 1, kind: input, shape index: {}]
  %s2 = inlined_call_operand.vmem [shape: f32[8,32], index: 2, kind: input, shape index: {}]
  %s3 = inlined_call_operand.vmem [shape: f32[2,1,32], index: 3, kind: input, shape index: {}]
  %s4 = inlined_call_operand.vmem [shape: f32[2,1,32], index: 4, kind: input, shape index: {}]
  %s5 = inlined_call_operand.vmem [shape: f32[2,32,96], index: 5, kind: input, shape index: {}]
  %s6 = inlined_call_operand.vmem [shape: f32[2,1,96], index: 6, kind: input, shape index: {}]
  %s7 = inlined_call_operand.vmem [shape: f32[2,32,32], index: 7, kind: input, shape index: {}]
  %s8 = inlined_call_operand.vmem [shape: f32[2,1,32], index: 8, kind: input, shape index: {}]
  %s9 = inlined_call_operand.vmem [shape: f32[2,1,32], index: 9, kind: input, shape index: {}]
  %s10 = inlined_call_operand.vmem [shape: f32[2,1,32], index: 10, kind: input, shape index: {}]
  %s11 = inlined_call_operand.vmem [shape: f32[2,32,128], index: 11, kind: input, shape index: {}]
  %s12 = inlined_call_operand.vmem [shape: f32[2,1,128], index: 12, kind: input, shape index: {}]
  %s13 = inlined_call_operand.vmem [shape: f32[2,128,32], index: 13, kind: input, shape index: {}]
  %s14 = inlined_call_operand.vmem [shape: f32[2,1,32], index: 14, kind: input, shape index: {}]
  %s15 = inlined_call_operand.vmem [shape: f32[1,32], index: 15, kind: input, shape index: {}]
  %s16 = inlined_call_operand.vmem [shape: f32[1,32], index: 16, kind: input, shape index: {}]
  %s17 = inlined_call_operand.vmem [shape: f32[16,128], index: 17, kind: output, shape index: {}]
  %s18 = sld [smem:[#allocation0]]
  $region101: #{gpt_forward.1} parent=0
    _
  %s20 = ssub.s32 1, %s18
  %s21 = scalar_select 0, %s20, %s18
  loop: start=0, step=1, limit=4
  $region2: #{gpt_forward.1} parent=0 // loop_pre_header
    _
  $region3: #{gpt_forward.1} parent=0 // loop_header
    %s23 = sphi 0, %s27
    %p24 = scmp.ge.s32.totalorder %s23, 4
    %s33 = sphi 0, %s35
    %s36 = sphi 0, %s33
    %s37 = sphi 0, %s36
    %s53 = sphi 0, %s37
    %s57 = sphi 0, %s57
    %s59 = sphi 0, %s57
    %s60 = sphi 0, %s59
    %s74 = sphi 0, %s60
    %s78 = sphi 0, %s78
    %s80 = sphi 0, %s78
    %s81 = sphi 0, %s80
    %s95 = sphi 0, %s81
    %s99 = sphi 0, %s99
    %s101 = sphi 0, %s99
    %s102 = sphi 0, %s101
    %s116 = sphi 0, %s102
    %s120 = sphi 0, %s120
    %s122 = sphi 0, %s120
    %s123 = sphi 0, %s122
    %s137 = sphi 0, %s123
    %s141 = sphi 0, %s141
    %s143 = sphi 0, %s141
    %s144 = sphi 0, %s143
    %s158 = sphi 0, %s144
    %s162 = sphi 0, %s162
    %s164 = sphi 0, %s162
    %s165 = sphi 0, %s164
    %s179 = sphi 0, %s165
    %s183 = sphi 0, %s183
    %s185 = sphi 0, %s183
    %s186 = sphi 0, %s185
    %s200 = sphi 0, %s186
    %s204 = sphi 0, %s204
    %s206 = sphi 0, %s204
    %s207 = sphi 0, %s206
    %s221 = sphi 0, %s207
    %s225 = sphi 0, %s225
    %s227 = sphi 0, %s225
    %s228 = sphi 0, %s227
    %s242 = sphi 0, %s228
    %s246 = sphi 0, %s246
    %s248 = sphi 0, %s246
    %s249 = sphi 0, %s248
    %s263 = sphi 0, %s249
    %s267 = sphi 0, %s267
    %s269 = sphi 0, %s267
    %s270 = sphi 0, %s269
    %s284 = sphi 0, %s270
    %s288 = sphi 0, %s288
    %s290 = sphi 0, %s288
    %s291 = sphi 0, %s290
    %s305 = sphi 0, %s291
    %s309 = sphi 0, %s309
    %s311 = sphi 0, %s309
    %s312 = sphi 0, %s311
    %s326 = sphi 0, %s312
    %s330 = sphi 0, %s330
    %s332 = sphi 0, %s330
    %s333 = sphi 0, %s332
    %s347 = sphi 0, %s333
    %s351 = sphi 0, %s351
    %s353 = sphi 0, %s351
    %s354 = sphi 0, %s353
    %s368 = sphi 0, %s354
    %s372 = sphi 0, %s372
    %s374 = sphi 0, %s372
    %s375 = sphi 0, %s374
    %s389 = sphi 0, %s375
    %s395 = sphi 0, %s397
    %s398 = sphi 0, %s395
    %s399 = sphi 0, %s398
    %s415 = sphi 0, %s399
  $region4: #{gpt_forward.1} parent=0 // loop_header_branch
    %26 = sbr.rel (%p24) target = $region8
  $region5: #{gpt_forward.1} parent=0 // loop_body
    %s28 = ssub.s32 %s23, 1
    %s29 = ssub.s32 %s23, 2
    %s30 = sadd.s32 %s23, 1
    %s31 = ssub.s32 %s23, %s30
    %p32 = scmp.eq.s32.totalorder %s31, 0
    %s34 = sadd.s32 %s33, 1
    %s35 = scalar_select %p32, %s33, %s34
    %p38 = pneg %p32
    %p39 = scmp.eq.s32.totalorder %s23, 1
    %p40 = por %p38, %p39
    %p41 = scmp.ne.s32.totalorder %s33, %s36
    %p42 = scmp.eq.s32.totalorder %s23, 0
    %p43 = por %p41, %p42
    %p44 = scmp.ne.s32.totalorder %s33, %s36
    %p45 = scmp.eq.s32.totalorder %s28, 1
    %p46 = por %p44, %p45
    %p47 = scmp.ne.s32.totalorder %s36, %s37
    %p48 = scmp.eq.s32.totalorder %s28, 0
    %p49 = por %p47, %p48
    %p50 = scmp.ne.s32.totalorder %s36, %s37
    %p51 = scmp.eq.s32.totalorder %s29, 1
    %p52 = por %p50, %p51
    %p54 = scmp.ne.s32.totalorder %s37, %s53
    %p55 = scmp.eq.s32.totalorder %s29, 0
    %p56 = por %p54, %p55
    %s58 = sadd.s32 %s57, 1
    %p61 = scmp.eq.s32.totalorder %s23, 1
    %p62 = scmp.ne.s32.totalorder %s57, %s59
    %p63 = scmp.eq.s32.totalorder %s23, 0
    %p64 = por %p62, %p63
    %p65 = scmp.ne.s32.totalorder %s57, %s59
    %p66 = scmp.eq.s32.totalorder %s28, 1
    %p67 = por %p65, %p66
    %p68 = scmp.ne.s32.totalorder %s59, %s60
    %p69 = scmp.eq.s32.totalorder %s28, 0
    %p70 = por %p68, %p69
    %p71 = scmp.ne.s32.totalorder %s59, %s60
    %p72 = scmp.eq.s32.totalorder %s29, 1
    %p73 = por %p71, %p72
    %p75 = scmp.ne.s32.totalorder %s60, %s74
    %p76 = scmp.eq.s32.totalorder %s29, 0
    %p77 = por %p75, %p76
    %s79 = sadd.s32 %s78, 1
    %p82 = scmp.eq.s32.totalorder %s23, 1
    %p83 = scmp.ne.s32.totalorder %s78, %s80
    %p84 = scmp.eq.s32.totalorder %s23, 0
    %p85 = por %p83, %p84
    %p86 = scmp.ne.s32.totalorder %s78, %s80
    %p87 = scmp.eq.s32.totalorder %s28, 1
    %p88 = por %p86, %p87
    %p89 = scmp.ne.s32.totalorder %s80, %s81
    %p90 = scmp.eq.s32.totalorder %s28, 0
    %p91 = por %p89, %p90
    %p92 = scmp.ne.s32.totalorder %s80, %s81
    %p93 = scmp.eq.s32.totalorder %s29, 1
    %p94 = por %p92, %p93
    %p96 = scmp.ne.s32.totalorder %s81, %s95
    %p97 = scmp.eq.s32.totalorder %s29, 0
    %p98 = por %p96, %p97
    %s100 = sadd.s32 %s99, 1
    %p103 = scmp.eq.s32.totalorder %s23, 1
    %p104 = scmp.ne.s32.totalorder %s99, %s101
    %p105 = scmp.eq.s32.totalorder %s23, 0
    %p106 = por %p104, %p105
    %p107 = scmp.ne.s32.totalorder %s99, %s101
    %p108 = scmp.eq.s32.totalorder %s28, 1
    %p109 = por %p107, %p108
    %p110 = scmp.ne.s32.totalorder %s101, %s102
    %p111 = scmp.eq.s32.totalorder %s28, 0
    %p112 = por %p110, %p111
    %p113 = scmp.ne.s32.totalorder %s101, %s102
    %p114 = scmp.eq.s32.totalorder %s29, 1
    %p115 = por %p113, %p114
    %p117 = scmp.ne.s32.totalorder %s102, %s116
    %p118 = scmp.eq.s32.totalorder %s29, 0
    %p119 = por %p117, %p118
    %s121 = sadd.s32 %s120, 1
    %p124 = scmp.eq.s32.totalorder %s23, 1
    %p125 = scmp.ne.s32.totalorder %s120, %s122
    %p126 = scmp.eq.s32.totalorder %s23, 0
    %p127 = por %p125, %p126
    %p128 = scmp.ne.s32.totalorder %s120, %s122
    %p129 = scmp.eq.s32.totalorder %s28, 1
    %p130 = por %p128, %p129
    %p131 = scmp.ne.s32.totalorder %s122, %s123
    %p132 = scmp.eq.s32.totalorder %s28, 0
    %p133 = por %p131, %p132
    %p134 = scmp.ne.s32.totalorder %s122, %s123
    %p135 = scmp.eq.s32.totalorder %s29, 1
    %p136 = por %p134, %p135
    %p138 = scmp.ne.s32.totalorder %s123, %s137
    %p139 = scmp.eq.s32.totalorder %s29, 0
    %p140 = por %p138, %p139
    %s142 = sadd.s32 %s141, 1
    %p145 = scmp.eq.s32.totalorder %s23, 1
    %p146 = scmp.ne.s32.totalorder %s141, %s143
    %p147 = scmp.eq.s32.totalorder %s23, 0
    %p148 = por %p146, %p147
    %p149 = scmp.ne.s32.totalorder %s141, %s143
    %p150 = scmp.eq.s32.totalorder %s28, 1
    %p151 = por %p149, %p150
    %p152 = scmp.ne.s32.totalorder %s143, %s144
    %p153 = scmp.eq.s32.totalorder %s28, 0
    %p154 = por %p152, %p153
    %p155 = scmp.ne.s32.totalorder %s143, %s144
    %p156 = scmp.eq.s32.totalorder %s29, 1
    %p157 = por %p155, %p156
    %p159 = scmp.ne.s32.totalorder %s144, %s158
    %p160 = scmp.eq.s32.totalorder %s29, 0
    %p161 = por %p159, %p160
    %s163 = sadd.s32 %s162, 1
    %p166 = scmp.eq.s32.totalorder %s23, 1
    %p167 = scmp.ne.s32.totalorder %s162, %s164
    %p168 = scmp.eq.s32.totalorder %s23, 0
    %p169 = por %p167, %p168
    %p170 = scmp.ne.s32.totalorder %s162, %s164
    %p171 = scmp.eq.s32.totalorder %s28, 1
    %p172 = por %p170, %p171
    %p173 = scmp.ne.s32.totalorder %s164, %s165
    %p174 = scmp.eq.s32.totalorder %s28, 0
    %p175 = por %p173, %p174
    %p176 = scmp.ne.s32.totalorder %s164, %s165
    %p177 = scmp.eq.s32.totalorder %s29, 1
    %p178 = por %p176, %p177
    %p180 = scmp.ne.s32.totalorder %s165, %s179
    %p181 = scmp.eq.s32.totalorder %s29, 0
    %p182 = por %p180, %p181
    %s184 = sadd.s32 %s183, 1
    %p187 = scmp.eq.s32.totalorder %s23, 1
    %p188 = scmp.ne.s32.totalorder %s183, %s185
    %p189 = scmp.eq.s32.totalorder %s23, 0
    %p190 = por %p188, %p189
    %p191 = scmp.ne.s32.totalorder %s183, %s185
    %p192 = scmp.eq.s32.totalorder %s28, 1
    %p193 = por %p191, %p192
    %p194 = scmp.ne.s32.totalorder %s185, %s186
    %p195 = scmp.eq.s32.totalorder %s28, 0
    %p196 = por %p194, %p195
    %p197 = scmp.ne.s32.totalorder %s185, %s186
    %p198 = scmp.eq.s32.totalorder %s29, 1
    %p199 = por %p197, %p198
    %p201 = scmp.ne.s32.totalorder %s186, %s200
    %p202 = scmp.eq.s32.totalorder %s29, 0
    %p203 = por %p201, %p202
    %s205 = sadd.s32 %s204, 1
    %p208 = scmp.eq.s32.totalorder %s23, 1
    %p209 = scmp.ne.s32.totalorder %s204, %s206
    %p210 = scmp.eq.s32.totalorder %s23, 0
    %p211 = por %p209, %p210
    %p212 = scmp.ne.s32.totalorder %s204, %s206
    %p213 = scmp.eq.s32.totalorder %s28, 1
    %p214 = por %p212, %p213
    %p215 = scmp.ne.s32.totalorder %s206, %s207
    %p216 = scmp.eq.s32.totalorder %s28, 0
    %p217 = por %p215, %p216
    %p218 = scmp.ne.s32.totalorder %s206, %s207
    %p219 = scmp.eq.s32.totalorder %s29, 1
    %p220 = por %p218, %p219
    %p222 = scmp.ne.s32.totalorder %s207, %s221
    %p223 = scmp.eq.s32.totalorder %s29, 0
    %p224 = por %p222, %p223
    %s226 = sadd.s32 %s225, 1
    %p229 = scmp.eq.s32.totalorder %s23, 1
    %p230 = scmp.ne.s32.totalorder %s225, %s227
    %p231 = scmp.eq.s32.totalorder %s23, 0
    %p232 = por %p230, %p231
    %p233 = scmp.ne.s32.totalorder %s225, %s227
    %p234 = scmp.eq.s32.totalorder %s28, 1
    %p235 = por %p233, %p234
    %p236 = scmp.ne.s32.totalorder %s227, %s228
    %p237 = scmp.eq.s32.totalorder %s28, 0
    %p238 = por %p236, %p237
    %p239 = scmp.ne.s32.totalorder %s227, %s228
    %p240 = scmp.eq.s32.totalorder %s29, 1
    %p241 = por %p239, %p240
    %p243 = scmp.ne.s32.totalorder %s228, %s242
    %p244 = scmp.eq.s32.totalorder %s29, 0
    %p245 = por %p243, %p244
    %s247 = sadd.s32 %s246, 1
    %p250 = scmp.eq.s32.totalorder %s23, 1
    %p251 = scmp.ne.s32.totalorder %s246, %s248
    %p252 = scmp.eq.s32.totalorder %s23, 0
    %p253 = por %p251, %p252
    %p254 = scmp.ne.s32.totalorder %s246, %s248
    %p255 = scmp.eq.s32.totalorder %s28, 1
    %p256 = por %p254, %p255
    %p257 = scmp.ne.s32.totalorder %s248, %s249
    %p258 = scmp.eq.s32.totalorder %s28, 0
    %p259 = por %p257, %p258
    %p260 = scmp.ne.s32.totalorder %s248, %s249
    %p261 = scmp.eq.s32.totalorder %s29, 1
    %p262 = por %p260, %p261
    %p264 = scmp.ne.s32.totalorder %s249, %s263
    %p265 = scmp.eq.s32.totalorder %s29, 0
    %p266 = por %p264, %p265
    %s268 = sadd.s32 %s267, 1
    %p271 = scmp.eq.s32.totalorder %s23, 1
    %p272 = scmp.ne.s32.totalorder %s267, %s269
    %p273 = scmp.eq.s32.totalorder %s23, 0
    %p274 = por %p272, %p273
    %p275 = scmp.ne.s32.totalorder %s267, %s269
    %p276 = scmp.eq.s32.totalorder %s28, 1
    %p277 = por %p275, %p276
    %p278 = scmp.ne.s32.totalorder %s269, %s270
    %p279 = scmp.eq.s32.totalorder %s28, 0
    %p280 = por %p278, %p279
    %p281 = scmp.ne.s32.totalorder %s269, %s270
    %p282 = scmp.eq.s32.totalorder %s29, 1
    %p283 = por %p281, %p282
    %p285 = scmp.ne.s32.totalorder %s270, %s284
    %p286 = scmp.eq.s32.totalorder %s29, 0
    %p287 = por %p285, %p286
    %s289 = sadd.s32 %s288, 1
    %p292 = scmp.eq.s32.totalorder %s23, 1
    %p293 = scmp.ne.s32.totalorder %s288, %s290
    %p294 = scmp.eq.s32.totalorder %s23, 0
    %p295 = por %p293, %p294
    %p296 = scmp.ne.s32.totalorder %s288, %s290
    %p297 = scmp.eq.s32.totalorder %s28, 1
    %p298 = por %p296, %p297
    %p299 = scmp.ne.s32.totalorder %s290, %s291
    %p300 = scmp.eq.s32.totalorder %s28, 0
    %p301 = por %p299, %p300
    %p302 = scmp.ne.s32.totalorder %s290, %s291
    %p303 = scmp.eq.s32.totalorder %s29, 1
    %p304 = por %p302, %p303
    %p306 = scmp.ne.s32.totalorder %s291, %s305
    %p307 = scmp.eq.s32.totalorder %s29, 0
    %p308 = por %p306, %p307
    %s310 = sadd.s32 %s309, 1
    %p313 = scmp.eq.s32.totalorder %s23, 1
    %p314 = scmp.ne.s32.totalorder %s309, %s311
    %p315 = scmp.eq.s32.totalorder %s23, 0
    %p316 = por %p314, %p315
    %p317 = scmp.ne.s32.totalorder %s309, %s311
    %p318 = scmp.eq.s32.totalorder %s28, 1
    %p319 = por %p317, %p318
    %p320 = scmp.ne.s32.totalorder %s311, %s312
    %p321 = scmp.eq.s32.totalorder %s28, 0
    %p322 = por %p320, %p321
    %p323 = scmp.ne.s32.totalorder %s311, %s312
    %p324 = scmp.eq.s32.totalorder %s29, 1
    %p325 = por %p323, %p324
    %p327 = scmp.ne.s32.totalorder %s312, %s326
    %p328 = scmp.eq.s32.totalorder %s29, 0
    %p329 = por %p327, %p328
    %s331 = sadd.s32 %s330, 1
    %p334 = scmp.eq.s32.totalorder %s23, 1
    %p335 = scmp.ne.s32.totalorder %s330, %s332
    %p336 = scmp.eq.s32.totalorder %s23, 0
    %p337 = por %p335, %p336
    %p338 = scmp.ne.s32.totalorder %s330, %s332
    %p339 = scmp.eq.s32.totalorder %s28, 1
    %p340 = por %p338, %p339
    %p341 = scmp.ne.s32.totalorder %s332, %s333
    %p342 = scmp.eq.s32.totalorder %s28, 0
    %p343 = por %p341, %p342
    %p344 = scmp.ne.s32.totalorder %s332, %s333
    %p345 = scmp.eq.s32.totalorder %s29, 1
    %p346 = por %p344, %p345
    %p348 = scmp.ne.s32.totalorder %s333, %s347
    %p349 = scmp.eq.s32.totalorder %s29, 0
    %p350 = por %p348, %p349
    %s352 = sadd.s32 %s351, 1
    %p355 = scmp.eq.s32.totalorder %s23, 1
    %p356 = scmp.ne.s32.totalorder %s351, %s353
    %p357 = scmp.eq.s32.totalorder %s23, 0
    %p358 = por %p356, %p357
    %p359 = scmp.ne.s32.totalorder %s351, %s353
    %p360 = scmp.eq.s32.totalorder %s28, 1
    %p361 = por %p359, %p360
    %p362 = scmp.ne.s32.totalorder %s353, %s354
    %p363 = scmp.eq.s32.totalorder %s28, 0
    %p364 = por %p362, %p363
    %p365 = scmp.ne.s32.totalorder %s353, %s354
    %p366 = scmp.eq.s32.totalorder %s29, 1
    %p367 = por %p365, %p366
    %p369 = scmp.ne.s32.totalorder %s354, %s368
    %p370 = scmp.eq.s32.totalorder %s29, 0
    %p371 = por %p369, %p370
    %s373 = sadd.s32 %s372, 1
    %p376 = scmp.eq.s32.totalorder %s23, 1
    %p377 = scmp.ne.s32.totalorder %s372, %s374
    %p378 = scmp.eq.s32.totalorder %s23, 0
    %p379 = por %p377, %p378
    %p380 = scmp.ne.s32.totalorder %s372, %s374
    %p381 = scmp.eq.s32.totalorder %s28, 1
    %p382 = por %p380, %p381
    %p383 = scmp.ne.s32.totalorder %s374, %s375
    %p384 = scmp.eq.s32.totalorder %s28, 0
    %p385 = por %p383, %p384
    %p386 = scmp.ne.s32.totalorder %s374, %s375
    %p387 = scmp.eq.s32.totalorder %s29, 1
    %p388 = por %p386, %p387
    %p390 = scmp.ne.s32.totalorder %s375, %s389
    %p391 = scmp.eq.s32.totalorder %s29, 0
    %p392 = por %p390, %p391
    %s393 = ssub.s32 %s23, %s30
    %p394 = scmp.eq.s32.totalorder %s393, 0
    %s396 = sadd.s32 %s395, 1
    %s397 = scalar_select %p394, %s395, %s396
    %p400 = pneg %p394
    %p401 = scmp.eq.s32.totalorder %s23, 1
    %p402 = por %p400, %p401
    %p403 = scmp.ne.s32.totalorder %s395, %s398
    %p404 = scmp.eq.s32.totalorder %s23, 0
    %p405 = por %p403, %p404
    %p406 = scmp.ne.s32.totalorder %s395, %s398
    %p407 = scmp.eq.s32.totalorder %s28, 1
    %p408 = por %p406, %p407
    %p409 = scmp.ne.s32.totalorder %s398, %s399
    %p410 = scmp.eq.s32.totalorder %s28, 0
    %p411 = por %p409, %p410
    %p412 = scmp.ne.s32.totalorder %s398, %s399
    %p413 = scmp.eq.s32.totalorder %s29, 1
    %p414 = por %p412, %p413
    %p416 = scmp.ne.s32.totalorder %s399, %s415
    %p417 = scmp.eq.s32.totalorder %s29, 0
    %p418 = por %p416, %p417
    %p419 = scmp.le.s32.totalorder 1, %s23
    %p420 = scmp.lt.s32.totalorder %s23, 3
    %p421 = pnand %p419, %p420
    %p422 = pneg %p421
    // Predicated region
    $region9: #{gpt_forward.1} parent=5 // pred_check
      _
    $region10: #{gpt_forward.1} parent=5 // pred_check_branch
      %424 = sbr.rel (%p421) target = $region12
    $region11: #{gpt_forward.1} parent=5 // pred_region
      %s425 = ssub.s32 %s23, 1
      // Predicated region
      $region13: #{gpt_forward.1} parent=11 // pred_check
        %p426 = pneg %p70
      $region14: #{gpt_forward.1} parent=11 // pred_check_branch
        %428 = sbr.rel (%p426) target = $region16
      $region15: #{gpt_forward.1} parent=11 // pred_region
        _
      $region16: #{gpt_forward.1} parent=11 // pred_fallthru
        _
      // Predicated region
      $region17: #{gpt_forward.1} parent=11 // pred_check
        %p429 = pneg %p91
      $region18: #{gpt_forward.1} parent=11 // pred_check_branch
        %431 = sbr.rel (%p429) target = $region20
      $region19: #{gpt_forward.1} parent=11 // pred_region
        _
      $region20: #{gpt_forward.1} parent=11 // pred_fallthru
        _
      // Predicated region
      $region21: #{gpt_forward.1} parent=11 // pred_check
        %p432 = pneg %p112
      $region22: #{gpt_forward.1} parent=11 // pred_check_branch
        %434 = sbr.rel (%p432) target = $region24
      $region23: #{gpt_forward.1} parent=11 // pred_region
        _
      $region24: #{gpt_forward.1} parent=11 // pred_fallthru
        _
      // Predicated region
      $region25: #{gpt_forward.1} parent=11 // pred_check
        %p435 = pneg %p133
      $region26: #{gpt_forward.1} parent=11 // pred_check_branch
        %437 = sbr.rel (%p435) target = $region28
      $region27: #{gpt_forward.1} parent=11 // pred_region
        _
      $region28: #{gpt_forward.1} parent=11 // pred_fallthru
        _
      // Predicated region
      $region29: #{gpt_forward.1} parent=11 // pred_check
        %p438 = pneg %p154
      $region30: #{gpt_forward.1} parent=11 // pred_check_branch
        %440 = sbr.rel (%p438) target = $region32
      $region31: #{gpt_forward.1} parent=11 // pred_region
        _
      $region32: #{gpt_forward.1} parent=11 // pred_fallthru
        _
      // Predicated region
      $region33: #{gpt_forward.1} parent=11 // pred_check
        %p441 = pneg %p175
      $region34: #{gpt_forward.1} parent=11 // pred_check_branch
        %443 = sbr.rel (%p441) target = $region36
      $region35: #{gpt_forward.1} parent=11 // pred_region
        _
      $region36: #{gpt_forward.1} parent=11 // pred_fallthru
        _
      // Predicated region
      $region37: #{gpt_forward.1} parent=11 // pred_check
        %p444 = pneg %p196
      $region38: #{gpt_forward.1} parent=11 // pred_check_branch
        %446 = sbr.rel (%p444) target = $region40
      $region39: #{gpt_forward.1} parent=11 // pred_region
        _
      $region40: #{gpt_forward.1} parent=11 // pred_fallthru
        _
      // Predicated region
      $region41: #{gpt_forward.1} parent=11 // pred_check
        %p447 = pneg %p217
      $region42: #{gpt_forward.1} parent=11 // pred_check_branch
        %449 = sbr.rel (%p447) target = $region44
      $region43: #{gpt_forward.1} parent=11 // pred_region
        _
      $region44: #{gpt_forward.1} parent=11 // pred_fallthru
        _
      // Predicated region
      $region45: #{gpt_forward.1} parent=11 // pred_check
        %p450 = pneg %p238
      $region46: #{gpt_forward.1} parent=11 // pred_check_branch
        %452 = sbr.rel (%p450) target = $region48
      $region47: #{gpt_forward.1} parent=11 // pred_region
        _
      $region48: #{gpt_forward.1} parent=11 // pred_fallthru
        _
      // Predicated region
      $region49: #{gpt_forward.1} parent=11 // pred_check
        %p453 = pneg %p259
      $region50: #{gpt_forward.1} parent=11 // pred_check_branch
        %455 = sbr.rel (%p453) target = $region52
      $region51: #{gpt_forward.1} parent=11 // pred_region
        _
      $region52: #{gpt_forward.1} parent=11 // pred_fallthru
        _
      // Predicated region
      $region53: #{gpt_forward.1} parent=11 // pred_check
        %p456 = pneg %p280
      $region54: #{gpt_forward.1} parent=11 // pred_check_branch
        %458 = sbr.rel (%p456) target = $region56
      $region55: #{gpt_forward.1} parent=11 // pred_region
        _
      $region56: #{gpt_forward.1} parent=11 // pred_fallthru
        _
      // Predicated region
      $region57: #{gpt_forward.1} parent=11 // pred_check
        %p459 = pneg %p301
      $region58: #{gpt_forward.1} parent=11 // pred_check_branch
        %461 = sbr.rel (%p459) target = $region60
      $region59: #{gpt_forward.1} parent=11 // pred_region
        _
      $region60: #{gpt_forward.1} parent=11 // pred_fallthru
        _
      // Predicated region
      $region61: #{gpt_forward.1} parent=11 // pred_check
        %p462 = pneg %p322
      $region62: #{gpt_forward.1} parent=11 // pred_check_branch
        %464 = sbr.rel (%p462) target = $region64
      $region63: #{gpt_forward.1} parent=11 // pred_region
        _
      $region64: #{gpt_forward.1} parent=11 // pred_fallthru
        _
      // Predicated region
      $region65: #{gpt_forward.1} parent=11 // pred_check
        %p465 = pneg %p343
      $region66: #{gpt_forward.1} parent=11 // pred_check_branch
        %467 = sbr.rel (%p465) target = $region68
      $region67: #{gpt_forward.1} parent=11 // pred_region
        _
      $region68: #{gpt_forward.1} parent=11 // pred_fallthru
        _
      // Predicated region
      $region69: #{gpt_forward.1} parent=11 // pred_check
        %p468 = pneg %p364
      $region70: #{gpt_forward.1} parent=11 // pred_check_branch
        %470 = sbr.rel (%p468) target = $region72
      $region71: #{gpt_forward.1} parent=11 // pred_region
        _
      $region72: #{gpt_forward.1} parent=11 // pred_fallthru
        _
      // Predicated region
      $region73: #{gpt_forward.1} parent=11 // pred_check
        %p471 = pneg %p385
      $region74: #{gpt_forward.1} parent=11 // pred_check_branch
        %473 = sbr.rel (%p471) target = $region76
      $region75: #{gpt_forward.1} parent=11 // pred_region
        _
      $region76: #{gpt_forward.1} parent=11 // pred_fallthru
        _
    $region12: #{gpt_forward.1} parent=5 // pred_fallthru
      _
    %p474 = scmp.lt.s32.totalorder %s23, 2
    // Predicated region
    $region77: #{gpt_forward.1} parent=5 // pred_check
      %p475 = pneg %p474
    $region78: #{gpt_forward.1} parent=5 // pred_check_branch
      %477 = sbr.rel (%p475) target = $region80
    $region79: #{gpt_forward.1} parent=5 // pred_region
      // Predicated region
      $region81: #{gpt_forward.1} parent=79 // pred_check
        %p478 = pneg %p43
      $region82: #{gpt_forward.1} parent=79 // pred_check_branch
        %480 = sbr.rel (%p478) target = $region84
      $region83: #{gpt_forward.1} parent=79 // pred_region
        %p481 = scmp.lt.s32.totalorder %s23, 1
        %s482 = scalar_select %p481, %s23, 1
        %s483 = smul.addr %s482, 8
        %s484 = scalar_lea.vmem %s0, %s483
      $region84: #{gpt_forward.1} parent=79 // pred_fallthru
        _
    $region80: #{gpt_forward.1} parent=5 // pred_fallthru
      _
    %p485 = scmp.le.s32.totalorder 1, %s23
    %p486 = scmp.lt.s32.totalorder %s23, 3
    %p487 = pnand %p485, %p486
    %p488 = pneg %p487
    // Predicated region
    $region85: #{gpt_forward.1} parent=5 // pred_check
      _
    $region86: #{gpt_forward.1} parent=5 // pred_check_branch
      %490 = sbr.rel (%p487) target = $region88
    $region87: #{gpt_forward.1} parent=5 // pred_region
      %s491 = ssub.s32 %s23, 1
      %p492 = scmp.lt.s32.totalorder %s28, 1
      %s493 = scalar_select %p492, %s28, 1
      %s494 = smul.addr %s493, 8
      %s495 = scalar_lea.vmem %s0, %s494
      %p496 = pneg %p49
      %p497 = pneg %p46
      %p498 = pneg %p70
      %p499 = pneg %p67
      %p500 = pneg %p91
      %p501 = pneg %p88
      %p502 = pneg %p112
      %p503 = pneg %p109
      %p504 = pneg %p133
      %p505 = pneg %p130
      %p506 = pneg %p154
      %p507 = pneg %p151
      %p508 = pneg %p175
      %p509 = pneg %p172
      %p510 = pneg %p196
      %p511 = pneg %p193
      %p512 = pneg %p217
      %p513 = pneg %p214
      %p514 = pneg %p238
      %p515 = pneg %p235
      %p516 = pneg %p259
      %p517 = pneg %p256
      %p518 = pneg %p280
      %p519 = pneg %p277
      %p520 = pneg %p301
      %p521 = pneg %p298
      %p522 = pneg %p322
      %p523 = pneg %p319
      %p524 = pneg %p343
      %p525 = pneg %p340
      %p526 = pneg %p364
      %p527 = pneg %p361
      %p528 = pneg %p385
      %p529 = pneg %p382
      %p530 = pneg %p411
      %p531 = pneg %p408
      %p532 = scmp.lt.s32.totalorder %s28, 1
      %s533 = scalar_select %p532, %s28, 1
      %s534 = smul.addr %s533, 8
      %s535 = scalar_lea.vmem %s17, %s534
      %p536 = scmp.lt.s32.totalorder %s28, 1
      %s537 = scalar_select %p536, %s28, 1
      %s538 = smul.addr %s537, 8
      %s539 = scalar_lea.vmem %s0, %s538
      %p540 = scmp.lt.s32.totalorder %s28, 1
      %s541 = scalar_select %p540, %s28, 1
      %s542 = smul.addr %s541, 8
      %s543 = scalar_lea.vmem %s17, %s542
      %v544 = vld [vmem:[%s539] sm:$0xff]
      %v545 = vld [vmem:[%s1] sm:$0xff]
      %v546 = vld [vmem:[%s1 + $0x8] sm:$0xff]
      %v547 = vld [vmem:[%s1 + $0x10] sm:$0xff]
      %v548 = vld [vmem:[%s1 + $0x18] sm:$0xff]
      %v549 = vld [vmem:[%s1 + $0x20] sm:$0xff]
      %v550 = vld [vmem:[%s1 + $0x28] sm:$0xff]
      %v551 = vld [vmem:[%s1 + $0x30] sm:$0xff]
      %v552 = vld [vmem:[%s1 + $0x38] sm:$0xff]
      %v553 = vld [vmem:[%s1 + $0x40] sm:$0xff]
      %v554 = vld [vmem:[%s1 + $0x48] sm:$0xff]
      %v555 = vld [vmem:[%s1 + $0x50] sm:$0xff]
      %v556 = vld [vmem:[%s1 + $0x58] sm:$0xff]
      %v557 = vld [vmem:[%s1 + $0x60] sm:$0xff]
      %v558 = vld [vmem:[%s1 + $0x68] sm:$0xff]
      %v559 = vld [vmem:[%s1 + $0x70] sm:$0xff]
      %v560 = vld [vmem:[%s1 + $0x78] sm:$0xff]
      %v561 = vlaneseq
      %v562 = vand.u32 %v561, 127
      %563 = vset.pattern.permute.xlu0 0
      %564 = vperm.xlu0 %563, %v544
      %v565 = vpop.permute.xlu0 %564
      %vm566 = vcmp.eq.s32.totalorder %v562, %v565
      %v567 = vsel %vm566, 1, 0
      %v568 = vcvt.s32.f32 %v567
      %v569 = vld [vmem:[%s2] sm:$0xff]
      %570 = vmatprep.subr.mxu0 0.0
      %571 = vmatpush1.msra.mxu0 %v560
      %572 = vmatprep.subr.mxu0 0.0
      %573 = vmatpush1.msra.mxu0 %v559
      %574 = vmatprep.subr.mxu0 0.0
      %575 = vmatpush1.msra.mxu0 %v558
      %576 = vmatprep.subr.mxu0 0.0
      %577 = vmatpush1.msra.mxu0 %v557
      %578 = vmatprep.subr.mxu0 0.0
      %579 = vmatpush1.msra.mxu0 %v556
      %580 = vmatprep.subr.mxu0 0.0
      %581 = vmatpush1.msra.mxu0 %v555
      %582 = vmatprep.subr.mxu0 0.0
      %583 = vmatpush1.msra.mxu0 %v554
      %584 = vmatprep.subr.mxu0 0.0
      %585 = vmatpush1.msra.mxu0 %v553
      %586 = vmatprep.subr.mxu0 0.0
      %587 = vmatpush1.msra.mxu0 %v552
      %588 = vmatprep.subr.mxu0 0.0
      %589 = vmatpush1.msra.mxu0 %v551
      %590 = vmatprep.subr.mxu0 0.0
      %591 = vmatpush1.msra.mxu0 %v550
      %592 = vmatprep.subr.mxu0 0.0
      %593 = vmatpush1.msra.mxu0 %v549
      %594 = vmatprep.subr.mxu0 0.0
      %595 = vmatpush1.msra.mxu0 %v548
      %596 = vmatprep.subr.mxu0 0.0
      %597 = vmatpush1.msra.mxu0 %v547
      %598 = vmatprep.subr.mxu0 0.0
      %599 = vmatpush1.msra.mxu0 %v546
      %600 = vmatprep.subr.mxu0 0.0
      %601 = vmatpush1.msra.mxu0 %v545
      %602 = vmatprep.subr.mxu0 0.0
      %603 = vmatpush2.msra.mxu0 0.0
      %604 = vmatprep.subr.mxu0 0.0
      %605 = vmatpush2.msra.mxu0 0.0
      %606 = vmatprep.subr.mxu0 0.0
      %607 = vmatpush2.msra.mxu0 0.0
      %608 = vmatprep.subr.mxu0 0.0
      %609 = vmatpush2.msra.mxu0 0.0
      %610 = vmatprep.subr.mxu0 0.0
      %611 = vmatpush2.msra.mxu0 0.0
      %612 = vmatprep.subr.mxu0 0.0
      %613 = vmatpush2.msra.mxu0 0.0
      %614 = vmatprep.subr.mxu0 0.0
      %615 = vmatpush2.msra.mxu0 0.0
      %616 = vmatprep.subr.mxu0 0.0
      %617 = vmatpush2.msra.mxu0 0.0
      %618 = vmatprep.subr.mxu0 0.0
      %619 = vmatpush2.msra.mxu0 0.0
      %620 = vmatprep.subr.mxu0 0.0
      %621 = vmatpush2.msra.mxu0 0.0
      %622 = vmatprep.subr.mxu0 0.0
      %623 = vmatpush2.msra.mxu0 0.0
      %624 = vmatprep.subr.mxu0 0.0
      %625 = vmatpush2.msra.mxu0 0.0
      %626 = vmatprep.subr.mxu0 0.0
      %627 = vmatpush2.msra.mxu0 0.0
      %628 = vmatprep.subr.mxu0 0.0
      %629 = vmatpush2.msra.mxu0 0.0
      %630 = vmatprep.subr.mxu0 0.0
      %631 = vmatpush2.msra.mxu0 0.0
      %632 = vmatprep.subr.mxu0 0.0
      %633 = vmatpush2.msra.mxu0 0.0
      %634 = vmatprep.mubr.f32.mxu0 0.0
      %635 = vmatmul.mubr.f32.gmra.mxu0 %v568
      %v636 = vpop.f32.mrf.mxu0
      %v637 = vadd.f32 %v569, %v636
      %v638 = vpop.f32.mrf.mxu0
      %639 = vdwg.mxu0
      %v640 = vld [vmem:[%s3] sm:$0x1]
      %v641 = vld [vmem:[%s4] sm:$0x1]
      %vm642 = vcmask 261120
      %v643 = vsel %vm642, %v637, 0.0
      %644 = vadd.xlane.f32.xlu0 %v643
      %v645 = vpop.xlane.xlu0 %644
      %v646 = vrcp.pop 32.0
      %v647 = vmul.f32 %v645, %v646
      %v648 = vsub.f32 %v637, %v647
      %v649 = vmul.f32 %v648, %v648
      %v650 = vsel %vm642, %v649, 0.0
      %651 = vadd.xlane.f32.xlu0 %v650
      %v652 = vpop.xlane.xlu0 %651
      %v653 = vmul.f32 %v652, %v646
      %v654 = vadd.f32 %v653, 1e-05
      %v655 = vrsqrt.pop %v654
      %v656 = vmul.f32 %v648, %v655
      %v658 = vlaneseq
      %v659 = vshrl.u32 %v658, 7
      %v660 = vsub.s32 0, %v659
      %v661 = vrot.slane %v640, %v660
      %v663 = vmul.f32 %v656, %v661
      %v665 = vlaneseq
      %v666 = vshrl.u32 %v665, 7
      %v667 = vsub.s32 0, %v666
      %v668 = vrot.slane %v641, %v667
      %v670 = vadd.f32 %v663, %v668
      %v671 = vld [vmem:[%s5] sm:$0xff]
      %v672 = vld [vmem:[%s5 + $0x8] sm:$0xff]
      %v673 = vld [vmem:[%s5 + $0x10] sm:$0xff]
      %v674 = vld [vmem:[%s5 + $0x18] sm:$0xff]
      %v675 = vld [vmem:[%s6] sm:$0x1]
      %v677 = vlaneseq
      %v678 = vshrl.u32 %v677, 7
      %v679 = vsub.s32 0, %v678
      %v680 = vrot.slane %v675, %v679
      %v683 = vsel %vm642, %v670, 0
      %685 = vmatprep.subr.mxu0 0.0
      %686 = vmatpush1.msra.mxu0 0.0
      %687 = vmatprep.subr.mxu0 0.0
      %688 = vmatpush1.msra.mxu0 0.0
      %689 = vmatprep.subr.mxu0 0.0
      %690 = vmatpush1.msra.mxu0 0.0
      %691 = vmatprep.subr.mxu0 0.0
      %692 = vmatpush1.msra.mxu0 0.0
      %693 = vmatprep.subr.mxu0 0.0
      %694 = vmatpush1.msra.mxu0 0.0
      %695 = vmatprep.subr.mxu0 0.0
      %696 = vmatpush1.msra.mxu0 0.0
      %697 = vmatprep.subr.mxu0 0.0
      %698 = vmatpush1.msra.mxu0 0.0
      %699 = vmatprep.subr.mxu0 0.0
      %700 = vmatpush1.msra.mxu0 0.0
      %701 = vmatprep.subr.mxu0 0.0
      %702 = vmatpush1.msra.mxu0 0.0
      %703 = vmatprep.subr.mxu0 0.0
      %704 = vmatpush1.msra.mxu0 0.0
      %705 = vmatprep.subr.mxu0 0.0
      %706 = vmatpush1.msra.mxu0 0.0
      %707 = vmatprep.subr.mxu0 0.0
      %708 = vmatpush1.msra.mxu0 0.0
      %709 = vmatprep.subr.mxu0 0.0
      %710 = vmatpush1.msra.mxu0 %v674
      %711 = vmatprep.subr.mxu0 0.0
      %712 = vmatpush1.msra.mxu0 %v673
      %713 = vmatprep.subr.mxu0 0.0
      %714 = vmatpush1.msra.mxu0 %v672
      %715 = vmatprep.subr.mxu0 0.0
      %716 = vmatpush1.msra.mxu0 %v671
      %717 = vmatprep.subr.mxu0 0.0
      %718 = vmatpush2.msra.mxu0 0.0
      %719 = vmatprep.subr.mxu0 0.0
      %720 = vmatpush2.msra.mxu0 0.0
      %721 = vmatprep.subr.mxu0 0.0
      %722 = vmatpush2.msra.mxu0 0.0
      %723 = vmatprep.subr.mxu0 0.0
      %724 = vmatpush2.msra.mxu0 0.0
      %725 = vmatprep.subr.mxu0 0.0
      %726 = vmatpush2.msra.mxu0 0.0
      %727 = vmatprep.subr.mxu0 0.0
      %728 = vmatpush2.msra.mxu0 0.0
      %729 = vmatprep.subr.mxu0 0.0
      %730 = vmatpush2.msra.mxu0 0.0
      %731 = vmatprep.subr.mxu0 0.0
      %732 = vmatpush2.msra.mxu0 0.0
      %733 = vmatprep.subr.mxu0 0.0
      %734 = vmatpush2.msra.mxu0 0.0
      %735 = vmatprep.subr.mxu0 0.0
      %736 = vmatpush2.msra.mxu0 0.0
      %737 = vmatprep.subr.mxu0 0.0
      %738 = vmatpush2.msra.mxu0 0.0
      %739 = vmatprep.subr.mxu0 0.0
      %740 = vmatpush2.msra.mxu0 0.0
      %741 = vmatprep.subr.mxu0 0.0
      %742 = vmatpush2.msra.mxu0 0.0
      %743 = vmatprep.subr.mxu0 0.0
      %744 = vmatpush2.msra.mxu0 0.0
      %745 = vmatprep.subr.mxu0 0.0
      %746 = vmatpush2.msra.mxu0 0.0
      %747 = vmatprep.subr.mxu0 0.0
      %748 = vmatpush2.msra.mxu0 0.0
      %749 = vmatprep.mubr.f32.mxu0 0.0
      %750 = vmatmul.mubr.f32.gmra.mxu0 %v683
      %v751 = vpop.f32.mrf.mxu0
      %v752 = vadd.f32 %v680, %v751
      %v753 = vpop.f32.mrf.mxu0
      %754 = vdwg.mxu0
      %756 = vrot.lane.b32.xlu0 %v752, 112
      %v757 = vpop.permute.xlu0 %756
      %758 = vrot.lane.b32.xlu0 %v752, 96
      %v759 = vpop.permute.xlu0 %758
      %vm760 = vcmask 130048
      %v761 = vsel %vm760, %v752, 0
      %v763 = vsel %vm760, %v759, 0
      %765 = vmatprep.subr.mxu0 0.0
      %766 = vmatpush1.xpose.msra.mxu0 0.0
      %767 = vmatprep.subr.mxu0 0.0
      %768 = vmatpush1.xpose.msra.mxu0 0.0
      %769 = vmatprep.subr.mxu0 0.0
      %770 = vmatpush1.xpose.msra.mxu0 0.0
      %771 = vmatprep.subr.mxu0 0.0
      %772 = vmatpush1.xpose.msra.mxu0 0.0
      %773 = vmatprep.subr.mxu0 0.0
      %774 = vmatpush1.xpose.msra.mxu0 0.0
      %775 = vmatprep.subr.mxu0 0.0
      %776 = vmatpush1.xpose.msra.mxu0 0.0
      %777 = vmatprep.subr.mxu0 0.0
      %778 = vmatpush1.xpose.msra.mxu0 0.0
      %779 = vmatprep.subr.mxu0 0.0
      %780 = vmatpush1.xpose.msra.mxu0 0.0
      %781 = vmatprep.subr.mxu0 0.0
      %782 = vmatpush1.xpose.msra.mxu0 0.0
      %783 = vmatprep.subr.mxu0 0.0
      %784 = vmatpush1.xpose.msra.mxu0 0.0
      %785 = vmatprep.subr.mxu0 0.0
      %786 = vmatpush1.xpose.msra.mxu0 0.0
      %787 = vmatprep.subr.mxu0 0.0
      %788 = vmatpush1.xpose.msra.mxu0 0.0
      %789 = vmatprep.subr.mxu0 0.0
      %790 = vmatpush1.xpose.msra.mxu0 0.0
      %791 = vmatprep.subr.mxu0 0.0
      %792 = vmatpush1.xpose.msra.mxu0 0.0
      %793 = vmatprep.subr.mxu0 0.0
      %794 = vmatpush1.xpose.msra.mxu0 0.0
      %795 = vmatprep.subr.mxu0 0.0
      %796 = vmatpush1.xpose.msra.mxu0 %v763
      %797 = vmatprep.subr.mxu0 0.0
      %798 = vmatpush2.xpose.msra.mxu0 0.0
      %799 = vmatprep.subr.mxu0 0.0
      %800 = vmatpush2.xpose.msra.mxu0 0.0
      %801 = vmatprep.subr.mxu0 0.0
      %802 = vmatpush2.xpose.msra.mxu0 0.0
      %803 = vmatprep.subr.mxu0 0.0
      %804 = vmatpush2.xpose.msra.mxu0 0.0
      %805 = vmatprep.subr.mxu0 0.0
      %806 = vmatpush2.xpose.msra.mxu0 0.0
      %807 = vmatprep.subr.mxu0 0.0
      %808 = vmatpush2.xpose.msra.mxu0 0.0
      %809 = vmatprep.subr.mxu0 0.0
      %810 = vmatpush2.xpose.msra.mxu0 0.0
      %811 = vmatprep.subr.mxu0 0.0
      %812 = vmatpush2.xpose.msra.mxu0 0.0
      %813 = vmatprep.subr.mxu0 0.0
      %814 = vmatpush2.xpose.msra.mxu0 0.0
      %815 = vmatprep.subr.mxu0 0.0
      %816 = vmatpush2.xpose.msra.mxu0 0.0
      %817 = vmatprep.subr.mxu0 0.0
      %818 = vmatpush2.xpose.msra.mxu0 0.0
      %819 = vmatprep.subr.mxu0 0.0
      %820 = vmatpush2.xpose.msra.mxu0 0.0
      %821 = vmatprep.subr.mxu0 0.0
      %822 = vmatpush2.xpose.msra.mxu0 0.0
      %823 = vmatprep.subr.mxu0 0.0
      %824 = vmatpush2.xpose.msra.mxu0 0.0
      %825 = vmatprep.subr.mxu0 0.0
      %826 = vmatpush2.xpose.msra.mxu0 0.0
      %827 = vmatprep.subr.mxu0 0.0
      %828 = vmatpush2.xpose.msra.mxu0 0.0
      %829 = vmatprep.mubr.f32.mxu0 0.0
      %830 = vmatmul.mubr.f32.gmra.mxu0 %v761
      %v831 = vpop.f32.mrf.mxu0
      %v832 = vadd.f32 0.0, %v831
      %v833 = vpop.f32.mrf.mxu0
      %834 = vdwg.mxu0
      %835 = vrot.lane.b32.xlu0 %v757, 96
      %v836 = vpop.permute.xlu0 %835
      %v837 = vsel %vm760, %v757, 0
      %v839 = vsel %vm760, %v836, 0
      %841 = vmatprep.subr.mxu0 0.0
      %842 = vmatpush1.xpose.msra.mxu0 0.0
      %843 = vmatprep.subr.mxu0 0.0
      %844 = vmatpush1.xpose.msra.mxu0 0.0
      %845 = vmatprep.subr.mxu0 0.0
      %846 = vmatpush1.xpose.msra.mxu0 0.0
      %847 = vmatprep.subr.mxu0 0.0
      %848 = vmatpush1.xpose.msra.mxu0 0.0
      %849 = vmatprep.subr.mxu0 0.0
      %850 = vmatpush1.xpose.msra.mxu0 0.0
      %851 = vmatprep.subr.mxu0 0.0
      %852 = vmatpush1.xpose.msra.mxu0 0.0
      %853 = vmatprep.subr.mxu0 0.0
      %854 = vmatpush1.xpose.msra.mxu0 0.0
      %855 = vmatprep.subr.mxu0 0.0
      %856 = vmatpush1.xpose.msra.mxu0 0.0
      %857 = vmatprep.subr.mxu0 0.0
      %858 = vmatpush1.xpose.msra.mxu0 0.0
      %859 = vmatprep.subr.mxu0 0.0
      %860 = vmatpush1.xpose.msra.mxu0 0.0
      %861 = vmatprep.subr.mxu0 0.0
      %862 = vmatpush1.xpose.msra.mxu0 0.0
      %863 = vmatprep.subr.mxu0 0.0
      %864 = vmatpush1.xpose.msra.mxu0 0.0
      %865 = vmatprep.subr.mxu0 0.0
      %866 = vmatpush1.xpose.msra.mxu0 0.0
      %867 = vmatprep.subr.mxu0 0.0
      %868 = vmatpush1.xpose.msra.mxu0 0.0
      %869 = vmatprep.subr.mxu0 0.0
      %870 = vmatpush1.xpose.msra.mxu0 0.0
      %871 = vmatprep.subr.mxu0 0.0
      %872 = vmatpush1.xpose.msra.mxu0 %v839
      %873 = vmatprep.subr.mxu0 0.0
      %874 = vmatpush2.xpose.msra.mxu0 0.0
      %875 = vmatprep.subr.mxu0 0.0
      %876 = vmatpush2.xpose.msra.mxu0 0.0
      %877 = vmatprep.subr.mxu0 0.0
      %878 = vmatpush2.xpose.msra.mxu0 0.0
      %879 = vmatprep.subr.mxu0 0.0
      %880 = vmatpush2.xpose.msra.mxu0 0.0
      %881 = vmatprep.subr.mxu0 0.0
      %882 = vmatpush2.xpose.msra.mxu0 0.0
      %883 = vmatprep.subr.mxu0 0.0
      %884 = vmatpush2.xpose.msra.mxu0 0.0
      %885 = vmatprep.subr.mxu0 0.0
      %886 = vmatpush2.xpose.msra.mxu0 0.0
      %887 = vmatprep.subr.mxu0 0.0
      %888 = vmatpush2.xpose.msra.mxu0 0.0
      %889 = vmatprep.subr.mxu0 0.0
      %890 = vmatpush2.xpose.msra.mxu0 0.0
      %891 = vmatprep.subr.mxu0 0.0
      %892 = vmatpush2.xpose.msra.mxu0 0.0
      %893 = vmatprep.subr.mxu0 0.0
      %894 = vmatpush2.xpose.msra.mxu0 0.0
      %895 = vmatprep.subr.mxu0 0.0
      %896 = vmatpush2.xpose.msra.mxu0 0.0
      %897 = vmatprep.subr.mxu0 0.0
      %898 = vmatpush2.xpose.msra.mxu0 0.0
      %899 = vmatprep.subr.mxu0 0.0
      %900 = vmatpush2.xpose.msra.mxu0 0.0
      %901 = vmatprep.subr.mxu0 0.0
      %902 = vmatpush2.xpose.msra.mxu0 0.0
      %903 = vmatprep.subr.mxu0 0.0
      %904 = vmatpush2.xpose.msra.mxu0 0.0
      %905 = vmatprep.mubr.f32.mxu0 0.0
      %906 = vmatmul.mubr.f32.gmra.mxu0 %v837
      %v907 = vpop.f32.mrf.mxu0
      %v908 = vadd.f32 0.0, %v907
      %v909 = vpop.f32.mrf.mxu0
      %910 = vdwg.mxu0
      %v911 = vmul.f32 %v832, 0.25
      %v912 = vmul.f32 %v908, 0.25
      %v913 = vlaneseq
      %v914 = vshrl.u32 %v913, 7
      %vm915 = vcmp.le.s32.totalorder %v562, %v914
      %v916 = vsel %vm915, %v911, -1e+30
      %v917 = vsel %vm915, %v912, -1e+30
      %vm918 = vcmask 64512
      %v919 = vsel %vm918, %v916, -inf
      %920 = vmax.xlane.f32.xlu0 %v919
      %v921 = vpop.xlane.xlu0 %920
      %v922 = vsel %vm918, %v917, -inf
      %923 = vmax.xlane.f32.xlu0 %v922
      %v924 = vpop.xlane.xlu0 %923
      %v925 = vsub.f32 %v916, %v921
      %v926 = vsub.f32 %v917, %v924
      %v927 = vmul.f32 %v925, 1.442695
      %v928 = vpow.pop %v927
      %v929 = vmul.f32 %v926, 1.442695
      %v930 = vpow.pop %v929
      %v931 = vsel %vm918, %v928, 0.0
      %932 = vadd.xlane.f32.xlu0 %v931
      %v933 = vpop.xlane.xlu0 %932
      %v934 = vsel %vm918, %v930, 0.0
      %935 = vadd.xlane.f32.xlu0 %v934
      %v936 = vpop.xlane.xlu0 %935
      %v937 = vrcp.pop %v933
      %v938 = vrcp.pop %v936
      %v939 = vmul.f32 %v928, %v937
      %v940 = vmul.f32 %v930, %v938
      %941 = vrot.lane.b32.xlu0 %v752, 64
      %v942 = vpop.permute.xlu0 %941
      %v945 = vsel %vm918, %v939, 0
      %947 = vmatprep.subr.mxu0 0.0
      %948 = vmatpush1.msra.mxu0 0.0
      %949 = vmatprep.subr.mxu0 0.0
      %950 = vmatpush1.msra.mxu0 0.0
      %951 = vmatprep.subr.mxu0 0.0
      %952 = vmatpush1.msra.mxu0 0.0
      %953 = vmatprep.subr.mxu0 0.0
      %954 = vmatpush1.msra.mxu0 0.0
      %955 = vmatprep.subr.mxu0 0.0
      %956 = vmatpush1.msra.mxu0 0.0
      %957 = vmatprep.subr.mxu0 0.0
      %958 = vmatpush1.msra.mxu0 0.0
      %959 = vmatprep.subr.mxu0 0.0
      %960 = vmatpush1.msra.mxu0 0.0
      %961 = vmatprep.subr.mxu0 0.0
      %962 = vmatpush1.msra.mxu0 0.0
      %963 = vmatprep.subr.mxu0 0.0
      %964 = vmatpush1.msra.mxu0 0.0
      %965 = vmatprep.subr.mxu0 0.0
      %966 = vmatpush1.msra.mxu0 0.0
      %967 = vmatprep.subr.mxu0 0.0
      %968 = vmatpush1.msra.mxu0 0.0
      %969 = vmatprep.subr.mxu0 0.0
      %970 = vmatpush1.msra.mxu0 0.0
      %971 = vmatprep.subr.mxu0 0.0
      %972 = vmatpush1.msra.mxu0 0.0
      %973 = vmatprep.subr.mxu0 0.0
      %974 = vmatpush1.msra.mxu0 0.0
      %975 = vmatprep.subr.mxu0 0.0
      %976 = vmatpush1.msra.mxu0 0.0
      %977 = vmatprep.subr.mxu0 0.0
      %978 = vmatpush1.msra.mxu0 %v942
      %979 = vmatprep.subr.mxu0 0.0
      %980 = vmatpush2.msra.mxu0 0.0
      %981 = vmatprep.subr.mxu0 0.0
      %982 = vmatpush2.msra.mxu0 0.0
      %983 = vmatprep.subr.mxu0 0.0
      %984 = vmatpush2.msra.mxu0 0.0
      %985 = vmatprep.subr.mxu0 0.0
      %986 = vmatpush2.msra.mxu0 0.0
      %987 = vmatprep.subr.mxu0 0.0
      %988 = vmatpush2.msra.mxu0 0.0
      %989 = vmatprep.subr.mxu0 0.0
      %990 = vmatpush2.msra.mxu0 0.0
      %991 = vmatprep.subr.mxu0 0.0
      %992 = vmatpush2.msra.mxu0 0.0
      %993 = vmatprep.subr.mxu0 0.0
      %994 = vmatpush2.msra.mxu0 0.0
      %995 = vmatprep.subr.mxu0 0.0
      %996 = vmatpush2.msra.mxu0 0.0
      %997 = vmatprep.subr.mxu0 0.0
      %998 = vmatpush2.msra.mxu0 0.0
      %999 = vmatprep.subr.mxu0 0.0
      %1000 = vmatpush2.msra.mxu0 0.0
      %1001 = vmatprep.subr.mxu0 0.0
      %1002 = vmatpush2.msra.mxu0 0.0
      %1003 = vmatprep.subr.mxu0 0.0
      %1004 = vmatpush2.msra.mxu0 0.0
      %1005 = vmatprep.subr.mxu0 0.0
      %1006 = vmatpush2.msra.mxu0 0.0
      %1007 = vmatprep.subr.mxu0 0.0
      %1008 = vmatpush2.msra.mxu0 0.0
      %1009 = vmatprep.subr.mxu0 0.0
      %1010 = vmatpush2.msra.mxu0 0.0
      %1011 = vmatprep.mubr.f32.mxu0 0.0
      %1012 = vmatmul.mubr.f32.gmra.mxu0 %v945
      %v1013 = vpop.f32.mrf.mxu0
      %v1014 = vadd.f32 0.0, %v1013
      %v1015 = vpop.f32.mrf.mxu0
      %1016 = vdwg.mxu0
      %1017 = vrot.lane.b32.xlu0 %v757, 64
      %v1018 = vpop.permute.xlu0 %1017
      %v1021 = vsel %vm918, %v940, 0
      %1023 = vmatprep.subr.mxu0 0.0
      %1024 = vmatpush1.msra.mxu0 0.0
      %1025 = vmatprep.subr.mxu0 0.0
      %1026 = vmatpush1.msra.mxu0 0.0
      %1027 = vmatprep.subr.mxu0 0.0
      %1028 = vmatpush1.msra.mxu0 0.0
      %1029 = vmatprep.subr.mxu0 0.0
      %1030 = vmatpush1.msra.mxu0 0.0
      %1031 = vmatprep.subr.mxu0 0.0
      %1032 = vmatpush1.msra.mxu0 0.0
      %1033 = vmatprep.subr.mxu0 0.0
      %1034 = vmatpush1.msra.mxu0 0.0
      %1035 = vmatprep.subr.mxu0 0.0
      %1036 = vmatpush1.msra.mxu0 0.0
      %1037 = vmatprep.subr.mxu0 0.0
      %1038 = vmatpush1.msra.mxu0 0.0
      %1039 = vmatprep.subr.mxu0 0.0
      %1040 = vmatpush1.msra.mxu0 0.0
      %1041 = vmatprep.subr.mxu0 0.0
      %1042 = vmatpush1.msra.mxu0 0.0
      %1043 = vmatprep.subr.mxu0 0.0
      %1044 = vmatpush1.msra.mxu0 0.0
      %1045 = vmatprep.subr.mxu0 0.0
      %1046 = vmatpush1.msra.mxu0 0.0
      %1047 = vmatprep.subr.mxu0 0.0
      %1048 = vmatpush1.msra.mxu0 0.0
      %1049 = vmatprep.subr.mxu0 0.0
      %1050 = vmatpush1.msra.mxu0 0.0
      %1051 = vmatprep.subr.mxu0 0.0
      %1052 = vmatpush1.msra.mxu0 0.0
      %1053 = vmatprep.subr.mxu0 0.0
      %1054 = vmatpush1.msra.mxu0 %v1018
      %1055 = vmatprep.subr.mxu0 0.0
      %1056 = vmatpush2.msra.mxu0 0.0
      %1057 = vmatprep.subr.mxu0 0.0
      %1058 = vmatpush2.msra.mxu0 0.0
      %1059 = vmatprep.subr.mxu0 0.0
      %1060 = vmatpush2.msra.mxu0 0.0
      %1061 = vmatprep.subr.mxu0 0.0
      %1062 = vmatpush2.msra.mxu0 0.0
      %1063 = vmatprep.subr.mxu0 0.0
      %1064 = vmatpush2.msra.mxu0 0.0
      %1065 = vmatprep.subr.mxu0 0.0
      %1066 = vmatpush2.msra.mxu0 0.0
      %1067 = vmatprep.subr.mxu0 0.0
      %1068 = vmatpush2.msra.mxu0 0.0
      %1069 = vmatprep.subr.mxu0 0.0
      %1070 = vmatpush2.msra.mxu0 0.0
      %1071 = vmatprep.subr.mxu0 0.0
      %1072 = vmatpush2.msra.mxu0 0.0
      %1073 = vmatprep.subr.mxu0 0.0
      %1074 = vmatpush2.msra.mxu0 0.0
      %1075 = vmatprep.subr.mxu0 0.0
      %1076 = vmatpush2.msra.mxu0 0.0
      %1077 = vmatprep.subr.mxu0 0.0
      %1078 = vmatpush2.msra.mxu0 0.0
      %1079 = vmatprep.subr.mxu0 0.0
      %1080 = vmatpush2.msra.mxu0 0.0
      %1081 = vmatprep.subr.mxu0 0.0
      %1082 = vmatpush2.msra.mxu0 0.0
      %1083 = vmatprep.subr.mxu0 0.0
      %1084 = vmatpush2.msra.mxu0 0.0
      %1085 = vmatprep.subr.mxu0 0.0
      %1086 = vmatpush2.msra.mxu0 0.0
      %1087 = vmatprep.mubr.f32.mxu0 0.0
      %1088 = vmatmul.mubr.f32.gmra.mxu0 %v1021
      %v1089 = vpop.f32.mrf.mxu0
      %v1090 = vadd.f32 0.0, %v1089
      %v1091 = vpop.f32.mrf.mxu0
      %1092 = vdwg.mxu0
      %1094 = vrot.lane.b32.xlu0 %v1090, 16
      %v1095 = vpop.permute.xlu0 %1094
      %v1097 = vsel %vm760, %v1014, %v1095
      %v1098 = vld [vmem:[%s7] sm:$0xff]
      %v1099 = vld [vmem:[%s7 + $0x8] sm:$0xff]
      %v1100 = vld [vmem:[%s7 + $0x10] sm:$0xff]
      %v1101 = vld [vmem:[%s7 + $0x18] sm:$0xff]
      %v1102 = vld [vmem:[%s8] sm:$0x1]
      %v1104 = vlaneseq
      %v1105 = vshrl.u32 %v1104, 7
      %v1106 = vsub.s32 0, %v1105
      %v1107 = vrot.slane %v1102, %v1106
      %v1110 = vsel %vm642, %v1097, 0
      %1112 = vmatprep.subr.mxu0 0.0
      %1113 = vmatpush1.msra.mxu0 0.0
      %1114 = vmatprep.subr.mxu0 0.0
      %1115 = vmatpush1.msra.mxu0 0.0
      %1116 = vmatprep.subr.mxu0 0.0
      %1117 = vmatpush1.msra.mxu0 0.0
      %1118 = vmatprep.subr.mxu0 0.0
      %1119 = vmatpush1.msra.mxu0 0.0
      %1120 = vmatprep.subr.mxu0 0.0
      %1121 = vmatpush1.msra.mxu0 0.0
      %1122 = vmatprep.subr.mxu0 0.0
      %1123 = vmatpush1.msra.mxu0 0.0
      %1124 = vmatprep.subr.mxu0 0.0
      %1125 = vmatpush1.msra.mxu0 0.0
      %1126 = vmatprep.subr.mxu0 0.0
      %1127 = vmatpush1.msra.mxu0 0.0
      %1128 = vmatprep.subr.mxu0 0.0
      %1129 = vmatpush1.msra.mxu0 0.0
      %1130 = vmatprep.subr.mxu0 0.0
      %1131 = vmatpush1.msra.mxu0 0.0
      %1132 = vmatprep.subr.mxu0 0.0
      %1133 = vmatpush1.msra.mxu0 0.0
      %1134 = vmatprep.subr.mxu0 0.0
      %1135 = vmatpush1.msra.mxu0 0.0
      %1136 = vmatprep.subr.mxu0 0.0
      %1137 = vmatpush1.msra.mxu0 %v1101
      %1138 = vmatprep.subr.mxu0 0.0
      %1139 = vmatpush1.msra.mxu0 %v1100
      %1140 = vmatprep.subr.mxu0 0.0
      %1141 = vmatpush1.msra.mxu0 %v1099
      %1142 = vmatprep.subr.mxu0 0.0
      %1143 = vmatpush1.msra.mxu0 %v1098
      %1144 = vmatprep.subr.mxu0 0.0
      %1145 = vmatpush2.msra.mxu0 0.0
      %1146 = vmatprep.subr.mxu0 0.0
      %1147 = vmatpush2.msra.mxu0 0.0
      %1148 = vmatprep.subr.mxu0 0.0
      %1149 = vmatpush2.msra.mxu0 0.0
      %1150 = vmatprep.subr.mxu0 0.0
      %1151 = vmatpush2.msra.mxu0 0.0
      %1152 = vmatprep.subr.mxu0 0.0
      %1153 = vmatpush2.msra.mxu0 0.0
      %1154 = vmatprep.subr.mxu0 0.0
      %1155 = vmatpush2.msra.mxu0 0.0
      %1156 = vmatprep.subr.mxu0 0.0
      %1157 = vmatpush2.msra.mxu0 0.0
      %1158 = vmatprep.subr.mxu0 0.0
      %1159 = vmatpush2.msra.mxu0 0.0
      %1160 = vmatprep.subr.mxu0 0.0
      %1161 = vmatpush2.msra.mxu0 0.0
      %1162 = vmatprep.subr.mxu0 0.0
      %1163 = vmatpush2.msra.mxu0 0.0
      %1164 = vmatprep.subr.mxu0 0.0
      %1165 = vmatpush2.msra.mxu0 0.0
      %1166 = vmatprep.subr.mxu0 0.0
      %1167 = vmatpush2.msra.mxu0 0.0
      %1168 = vmatprep.subr.mxu0 0.0
      %1169 = vmatpush2.msra.mxu0 0.0
      %1170 = vmatprep.subr.mxu0 0.0
      %1171 = vmatpush2.msra.mxu0 0.0
      %1172 = vmatprep.subr.mxu0 0.0
      %1173 = vmatpush2.msra.mxu0 0.0
      %1174 = vmatprep.subr.mxu0 0.0
      %1175 = vmatpush2.msra.mxu0 0.0
      %1176 = vmatprep.mubr.f32.mxu0 0.0
      %1177 = vmatmul.mubr.f32.gmra.mxu0 %v1110
      %v1178 = vpop.f32.mrf.mxu0
      %v1179 = vadd.f32 %v1107, %v1178
      %v1180 = vpop.f32.mrf.mxu0
      %1181 = vdwg.mxu0
      %v1182 = vadd.f32 %v637, %v1179
      %v1183 = vld [vmem:[%s9] sm:$0x1]
      %v1184 = vld [vmem:[%s10] sm:$0x1]
      %v1185 = vsel %vm642, %v1182, 0.0
      %1186 = vadd.xlane.f32.xlu0 %v1185
      %v1187 = vpop.xlane.xlu0 %1186
      %v1188 = vmul.f32 %v1187, %v646
      %v1189 = vsub.f32 %v1182, %v1188
      %v1190 = vmul.f32 %v1189, %v1189
      %v1191 = vsel %vm642, %v1190, 0.0
      %1192 = vadd.xlane.f32.xlu0 %v1191
      %v1193 = vpop.xlane.xlu0 %1192
      %v1194 = vmul.f32 %v1193, %v646
      %v1195 = vadd.f32 %v1194, 1e-05
      %v1196 = vrsqrt.pop %v1195
      %v1197 = vmul.f32 %v1189, %v1196
      %v1199 = vlaneseq
      %v1200 = vshrl.u32 %v1199, 7
      %v1201 = vsub.s32 0, %v1200
      %v1202 = vrot.slane %v1183, %v1201
      %v1204 = vmul.f32 %v1197, %v1202
      %v1206 = vlaneseq
      %v1207 = vshrl.u32 %v1206, 7
      %v1208 = vsub.s32 0, %v1207
      %v1209 = vrot.slane %v1184, %v1208
      %v1211 = vadd.f32 %v1204, %v1209
      %v1212 = vld [vmem:[%s11] sm:$0xff]
      %v1213 = vld [vmem:[%s11 + $0x8] sm:$0xff]
      %v1214 = vld [vmem:[%s11 + $0x10] sm:$0xff]
      %v1215 = vld [vmem:[%s11 + $0x18] sm:$0xff]
      %v1216 = vld [vmem:[%s12] sm:$0x1]
      %v1218 = vlaneseq
      %v1219 = vshrl.u32 %v1218, 7
      %v1220 = vsub.s32 0, %v1219
      %v1221 = vrot.slane %v1216, %v1220
      %v1224 = vsel %vm642, %v1211, 0
      %1226 = vmatprep.subr.mxu0 0.0
      %1227 = vmatpush1.msra.mxu0 0.0
      %1228 = vmatprep.subr.mxu0 0.0
      %1229 = vmatpush1.msra.mxu0 0.0
      %1230 = vmatprep.subr.mxu0 0.0
      %1231 = vmatpush1.msra.mxu0 0.0
      %1232 = vmatprep.subr.mxu0 0.0
      %1233 = vmatpush1.msra.mxu0 0.0
      %1234 = vmatprep.subr.mxu0 0.0
      %1235 = vmatpush1.msra.mxu0 0.0
      %1236 = vmatprep.subr.mxu0 0.0
      %1237 = vmatpush1.msra.mxu0 0.0
      %1238 = vmatprep.subr.mxu0 0.0
      %1239 = vmatpush1.msra.mxu0 0.0
      %1240 = vmatprep.subr.mxu0 0.0
      %1241 = vmatpush1.msra.mxu0 0.0
      %1242 = vmatprep.subr.mxu0 0.0
      %1243 = vmatpush1.msra.mxu0 0.0
      %1244 = vmatprep.subr.mxu0 0.0
      %1245 = vmatpush1.msra.mxu0 0.0
      %1246 = vmatprep.subr.mxu0 0.0
      %1247 = vmatpush1.msra.mxu0 0.0
      %1248 = vmatprep.subr.mxu0 0.0
      %1249 = vmatpush1.msra.mxu0 0.0
      %1250 = vmatprep.subr.mxu0 0.0
      %1251 = vmatpush1.msra.mxu0 %v1215
      %1252 = vmatprep.subr.mxu0 0.0
      %1253 = vmatpush1.msra.mxu0 %v1214
      %1254 = vmatprep.subr.mxu0 0.0
      %1255 = vmatpush1.msra.mxu0 %v1213
      %1256 = vmatprep.subr.mxu0 0.0
      %1257 = vmatpush1.msra.mxu0 %v1212
      %1258 = vmatprep.subr.mxu0 0.0
      %1259 = vmatpush2.msra.mxu0 0.0
      %1260 = vmatprep.subr.mxu0 0.0
      %1261 = vmatpush2.msra.mxu0 0.0
      %1262 = vmatprep.subr.mxu0 0.0
      %1263 = vmatpush2.msra.mxu0 0.0
      %1264 = vmatprep.subr.mxu0 0.0
      %1265 = vmatpush2.msra.mxu0 0.0
      %1266 = vmatprep.subr.mxu0 0.0
      %1267 = vmatpush2.msra.mxu0 0.0
      %1268 = vmatprep.subr.mxu0 0.0
      %1269 = vmatpush2.msra.mxu0 0.0
      %1270 = vmatprep.subr.mxu0 0.0
      %1271 = vmatpush2.msra.mxu0 0.0
      %1272 = vmatprep.subr.mxu0 0.0
      %1273 = vmatpush2.msra.mxu0 0.0
      %1274 = vmatprep.subr.mxu0 0.0
      %1275 = vmatpush2.msra.mxu0 0.0
      %1276 = vmatprep.subr.mxu0 0.0
      %1277 = vmatpush2.msra.mxu0 0.0
      %1278 = vmatprep.subr.mxu0 0.0
      %1279 = vmatpush2.msra.mxu0 0.0
      %1280 = vmatprep.subr.mxu0 0.0
      %1281 = vmatpush2.msra.mxu0 0.0
      %1282 = vmatprep.subr.mxu0 0.0
      %1283 = vmatpush2.msra.mxu0 0.0
      %1284 = vmatprep.subr.mxu0 0.0
      %1285 = vmatpush2.msra.mxu0 0.0
      %1286 = vmatprep.subr.mxu0 0.0
      %1287 = vmatpush2.msra.mxu0 0.0
      %1288 = vmatprep.subr.mxu0 0.0
      %1289 = vmatpush2.msra.mxu0 0.0
      %1290 = vmatprep.mubr.f32.mxu0 0.0
      %1291 = vmatmul.mubr.f32.gmra.mxu0 %v1224
      %v1292 = vpop.f32.mrf.mxu0
      %v1293 = vadd.f32 %v1221, %v1292
      %v1294 = vpop.f32.mrf.mxu0
      %1295 = vdwg.mxu0
      %v1296 = vmul.f32 %v1293, 0.5
      %v1297 = vmul.f32 %v1293, 0.044715
      %v1298 = vmul.f32 %v1297, %v1293
      %v1299 = vmul.f32 %v1298, %v1293
      %v1300 = vadd.f32 %v1293, %v1299
      %v1301 = vmul.f32 %v1300, 0.7978846
      %v1302 = vtanh.pop %v1301
      %v1303 = vadd.f32 %v1302, 1.0
      %v1304 = vmul.f32 %v1296, %v1303
      %v1305 = vld [vmem:[%s13] sm:$0xff]
      %v1306 = vld [vmem:[%s13 + $0x8] sm:$0xff]
      %v1307 = vld [vmem:[%s13 + $0x10] sm:$0xff]
      %v1308 = vld [vmem:[%s13 + $0x18] sm:$0xff]
      %v1309 = vld [vmem:[%s13 + $0x20] sm:$0xff]
      %v1310 = vld [vmem:[%s13 + $0x28] sm:$0xff]
      %v1311 = vld [vmem:[%s13 + $0x30] sm:$0xff]
      %v1312 = vld [vmem:[%s13 + $0x38] sm:$0xff]
      %v1313 = vld [vmem:[%s13 + $0x40] sm:$0xff]
      %v1314 = vld [vmem:[%s13 + $0x48] sm:$0xff]
      %v1315 = vld [vmem:[%s13 + $0x50] sm:$0xff]
      %v1316 = vld [vmem:[%s13 + $0x58] sm:$0xff]
      %v1317 = vld [vmem:[%s13 + $0x60] sm:$0xff]
      %v1318 = vld [vmem:[%s13 + $0x68] sm:$0xff]
      %v1319 = vld [vmem:[%s13 + $0x70] sm:$0xff]
      %v1320 = vld [vmem:[%s13 + $0x78] sm:$0xff]
      %v1321 = vld [vmem:[%s14] sm:$0x1]
      %v1323 = vlaneseq
      %v1324 = vshrl.u32 %v1323, 7
      %v1325 = vsub.s32 0, %v1324
      %v1326 = vrot.slane %v1321, %v1325
      %1328 = vmatprep.subr.mxu0 0.0
      %1329 = vmatpush1.msra.mxu0 %v1320
      %1330 = vmatprep.subr.mxu0 0.0
      %1331 = vmatpush1.msra.mxu0 %v1319
      %1332 = vmatprep.subr.mxu0 0.0
      %1333 = vmatpush1.msra.mxu0 %v1318
      %1334 = vmatprep.subr.mxu0 0.0
      %1335 = vmatpush1.msra.mxu0 %v1317
      %1336 = vmatprep.subr.mxu0 0.0
      %1337 = vmatpush1.msra.mxu0 %v1316
      %1338 = vmatprep.subr.mxu0 0.0
      %1339 = vmatpush1.msra.mxu0 %v1315
      %1340 = vmatprep.subr.mxu0 0.0
      %1341 = vmatpush1.msra.mxu0 %v1314
      %1342 = vmatprep.subr.mxu0 0.0
      %1343 = vmatpush1.msra.mxu0 %v1313
      %1344 = vmatprep.subr.mxu0 0.0
      %1345 = vmatpush1.msra.mxu0 %v1312
      %1346 = vmatprep.subr.mxu0 0.0
      %1347 = vmatpush1.msra.mxu0 %v1311
      %1348 = vmatprep.subr.mxu0 0.0
      %1349 = vmatpush1.msra.mxu0 %v1310
      %1350 = vmatprep.subr.mxu0 0.0
      %1351 = vmatpush1.msra.mxu0 %v1309
      %1352 = vmatprep.subr.mxu0 0.0
      %1353 = vmatpush1.msra.mxu0 %v1308
      %1354 = vmatprep.subr.mxu0 0.0
      %1355 = vmatpush1.msra.mxu0 %v1307
      %1356 = vmatprep.subr.mxu0 0.0
      %1357 = vmatpush1.msra.mxu0 %v1306
      %1358 = vmatprep.subr.mxu0 0.0
      %1359 = vmatpush1.msra.mxu0 %v1305
      %1360 = vmatprep.subr.mxu0 0.0
      %1361 = vmatpush2.msra.mxu0 0.0
      %1362 = vmatprep.subr.mxu0 0.0
      %1363 = vmatpush2.msra.mxu0 0.0
      %1364 = vmatprep.subr.mxu0 0.0
      %1365 = vmatpush2.msra.mxu0 0.0
      %1366 = vmatprep.subr.mxu0 0.0
      %1367 = vmatpush2.msra.mxu0 0.0
      %1368 = vmatprep.subr.mxu0 0.0
      %1369 = vmatpush2.msra.mxu0 0.0
      %1370 = vmatprep.subr.mxu0 0.0
      %1371 = vmatpush2.msra.mxu0 0.0
      %1372 = vmatprep.subr.mxu0 0.0
      %1373 = vmatpush2.msra.mxu0 0.0
      %1374 = vmatprep.subr.mxu0 0.0
      %1375 = vmatpush2.msra.mxu0 0.0
      %1376 = vmatprep.subr.mxu0 0.0
      %1377 = vmatpush2.msra.mxu0 0.0
      %1378 = vmatprep.subr.mxu0 0.0
      %1379 = vmatpush2.msra.mxu0 0.0
      %1380 = vmatprep.subr.mxu0 0.0
      %1381 = vmatpush2.msra.mxu0 0.0
      %1382 = vmatprep.subr.mxu0 0.0
      %1383 = vmatpush2.msra.mxu0 0.0
      %1384 = vmatprep.subr.mxu0 0.0
      %1385 = vmatpush2.msra.mxu0 0.0
      %1386 = vmatprep.subr.mxu0 0.0
      %1387 = vmatpush2.msra.mxu0 0.0
      %1388 = vmatprep.subr.mxu0 0.0
      %1389 = vmatpush2.msra.mxu0 0.0
      %1390 = vmatprep.subr.mxu0 0.0
      %1391 = vmatpush2.msra.mxu0 0.0
      %1392 = vmatprep.mubr.f32.mxu0 0.0
      %1393 = vmatmul.mubr.f32.gmra.mxu0 %v1304
      %v1394 = vpop.f32.mrf.mxu0
      %v1395 = vadd.f32 %v1326, %v1394
      %v1396 = vpop.f32.mrf.mxu0
      %1397 = vdwg.mxu0
      %v1398 = vadd.f32 %v1182, %v1395
      %s1399 = scalar_lea.vmem %s3, 1
      %v1400 = vld [vmem:[%s1399] sm:$0x1]
      %s1401 = scalar_lea.vmem %s4, 1
      %v1402 = vld [vmem:[%s1401] sm:$0x1]
      %v1403 = vsel %vm642, %v1398, 0.0
      %1404 = vadd.xlane.f32.xlu0 %v1403
      %v1405 = vpop.xlane.xlu0 %1404
      %v1406 = vmul.f32 %v1405, %v646
      %v1407 = vsub.f32 %v1398, %v1406
      %v1408 = vmul.f32 %v1407, %v1407
      %v1409 = vsel %vm642, %v1408, 0.0
      %1410 = vadd.xlane.f32.xlu0 %v1409
      %v1411 = vpop.xlane.xlu0 %1410
      %v1412 = vmul.f32 %v1411, %v646
      %v1413 = vadd.f32 %v1412, 1e-05
      %v1414 = vrsqrt.pop %v1413
      %v1415 = vmul.f32 %v1407, %v1414
      %v1417 = vlaneseq
      %v1418 = vshrl.u32 %v1417, 7
      %v1419 = vsub.s32 0, %v1418
      %v1420 = vrot.slane %v1400, %v1419
      %v1422 = vmul.f32 %v1415, %v1420
      %v1424 = vlaneseq
      %v1425 = vshrl.u32 %v1424, 7
      %v1426 = vsub.s32 0, %v1425
      %v1427 = vrot.slane %v1402, %v1426
      %v1429 = vadd.f32 %v1422, %v1427
      %s1430 = scalar_lea.vmem %s5, 32
      %v1431 = vld [vmem:[%s1430] sm:$0xff]
      %v1432 = vld [vmem:[%s1430 + $0x8] sm:$0xff]
      %v1433 = vld [vmem:[%s1430 + $0x10] sm:$0xff]
      %v1434 = vld [vmem:[%s1430 + $0x18] sm:$0xff]
      %s1435 = scalar_lea.vmem %s6, 1
      %v1436 = vld [vmem:[%s1435] sm:$0x1]
      %v1438 = vlaneseq
      %v1439 = vshrl.u32 %v1438, 7
      %v1440 = vsub.s32 0, %v1439
      %v1441 = vrot.slane %v1436, %v1440
      %v1444 = vsel %vm642, %v1429, 0
      %1446 = vmatprep.subr.mxu0 0.0
      %1447 = vmatpush1.msra.mxu0 0.0
      %1448 = vmatprep.subr.mxu0 0.0
      %1449 = vmatpush1.msra.mxu0 0.0
      %1450 = vmatprep.subr.mxu0 0.0
      %1451 = vmatpush1.msra.mxu0 0.0
      %1452 = vmatprep.subr.mxu0 0.0
      %1453 = vmatpush1.msra.mxu0 0.0
      %1454 = vmatprep.subr.mxu0 0.0
      %1455 = vmatpush1.msra.mxu0 0.0
      %1456 = vmatprep.subr.mxu0 0.0
      %1457 = vmatpush1.msra.mxu0 0.0
      %1458 = vmatprep.subr.mxu0 0.0
      %1459 = vmatpush1.msra.mxu0 0.0
      %1460 = vmatprep.subr.mxu0 0.0
      %1461 = vmatpush1.msra.mxu0 0.0
      %1462 = vmatprep.subr.mxu0 0.0
      %1463 = vmatpush1.msra.mxu0 0.0
      %1464 = vmatprep.subr.mxu0 0.0
      %1465 = vmatpush1.msra.mxu0 0.0
      %1466 = vmatprep.subr.mxu0 0.0
      %1467 = vmatpush1.msra.mxu0 0.0
      %1468 = vmatprep.subr.mxu0 0.0
      %1469 = vmatpush1.msra.mxu0 0.0
      %1470 = vmatprep.subr.mxu0 0.0
      %1471 = vmatpush1.msra.mxu0 %v1434
      %1472 = vmatprep.subr.mxu0 0.0
      %1473 = vmatpush1.msra.mxu0 %v1433
      %1474 = vmatprep.subr.mxu0 0.0
      %1475 = vmatpush1.msra.mxu0 %v1432
      %1476 = vmatprep.subr.mxu0 0.0
      %1477 = vmatpush1.msra.mxu0 %v1431
      %1478 = vmatprep.subr.mxu0 0.0
      %1479 = vmatpush2.msra.mxu0 0.0
      %1480 = vmatprep.subr.mxu0 0.0
      %1481 = vmatpush2.msra.mxu0 0.0
      %1482 = vmatprep.subr.mxu0 0.0
      %1483 = vmatpush2.msra.mxu0 0.0
      %1484 = vmatprep.subr.mxu0 0.0
      %1485 = vmatpush2.msra.mxu0 0.0
      %1486 = vmatprep.subr.mxu0 0.0
      %1487 = vmatpush2.msra.mxu0 0.0
      %1488 = vmatprep.subr.mxu0 0.0
      %1489 = vmatpush2.msra.mxu0 0.0
      %1490 = vmatprep.subr.mxu0 0.0
      %1491 = vmatpush2.msra.mxu0 0.0
      %1492 = vmatprep.subr.mxu0 0.0
      %1493 = vmatpush2.msra.mxu0 0.0
      %1494 = vmatprep.subr.mxu0 0.0
      %1495 = vmatpush2.msra.mxu0 0.0
      %1496 = vmatprep.subr.mxu0 0.0
      %1497 = vmatpush2.msra.mxu0 0.0
      %1498 = vmatprep.subr.mxu0 0.0
      %1499 = vmatpush2.msra.mxu0 0.0
      %1500 = vmatprep.subr.mxu0 0.0
      %1501 = vmatpush2.msra.mxu0 0.0
      %1502 = vmatprep.subr.mxu0 0.0
      %1503 = vmatpush2.msra.mxu0 0.0
      %1504 = vmatprep.subr.mxu0 0.0
      %1505 = vmatpush2.msra.mxu0 0.0
      %1506 = vmatprep.subr.mxu0 0.0
      %1507 = vmatpush2.msra.mxu0 0.0
      %1508 = vmatprep.subr.mxu0 0.0
      %1509 = vmatpush2.msra.mxu0 0.0
      %1510 = vmatprep.mubr.f32.mxu0 0.0
      %1511 = vmatmul.mubr.f32.gmra.mxu0 %v1444
      %v1512 = vpop.f32.mrf.mxu0
      %v1513 = vadd.f32 %v1441, %v1512
      %v1514 = vpop.f32.mrf.mxu0
      %1515 = vdwg.mxu0
      %1517 = vrot.lane.b32.xlu0 %v1513, 112
      %v1518 = vpop.permute.xlu0 %1517
      %1519 = vrot.lane.b32.xlu0 %v1513, 96
      %v1520 = vpop.permute.xlu0 %1519
      %v1521 = vsel %vm760, %v1513, 0
      %v1523 = vsel %vm760, %v1520, 0
      %1525 = vmatprep.subr.mxu0 0.0
      %1526 = vmatpush1.xpose.msra.mxu0 0.0
      %1527 = vmatprep.subr.mxu0 0.0
      %1528 = vmatpush1.xpose.msra.mxu0 0.0
      %1529 = vmatprep.subr.mxu0 0.0
      %1530 = vmatpush1.xpose.msra.mxu0 0.0
      %1531 = vmatprep.subr.mxu0 0.0
      %1532 = vmatpush1.xpose.msra.mxu0 0.0
      %1533 = vmatprep.subr.mxu0 0.0
      %1534 = vmatpush1.xpose.msra.mxu0 0.0
      %1535 = vmatprep.subr.mxu0 0.0
      %1536 = vmatpush1.xpose.msra.mxu0 0.0
      %1537 = vmatprep.subr.mxu0 0.0
      %1538 = vmatpush1.xpose.msra.mxu0 0.0
      %1539 = vmatprep.subr.mxu0 0.0
      %1540 = vmatpush1.xpose.msra.mxu0 0.0
      %1541 = vmatprep.subr.mxu0 0.0
      %1542 = vmatpush1.xpose.msra.mxu0 0.0
      %1543 = vmatprep.subr.mxu0 0.0
      %1544 = vmatpush1.xpose.msra.mxu0 0.0
      %1545 = vmatprep.subr.mxu0 0.0
      %1546 = vmatpush1.xpose.msra.mxu0 0.0
      %1547 = vmatprep.subr.mxu0 0.0
      %1548 = vmatpush1.xpose.msra.mxu0 0.0
      %1549 = vmatprep.subr.mxu0 0.0
      %1550 = vmatpush1.xpose.msra.mxu0 0.0
      %1551 = vmatprep.subr.mxu0 0.0
      %1552 = vmatpush1.xpose.msra.mxu0 0.0
      %1553 = vmatprep.subr.mxu0 0.0
      %1554 = vmatpush1.xpose.msra.mxu0 0.0
      %1555 = vmatprep.subr.mxu0 0.0
      %1556 = vmatpush1.xpose.msra.mxu0 %v1523
      %1557 = vmatprep.subr.mxu0 0.0
      %1558 = vmatpush2.xpose.msra.mxu0 0.0
      %1559 = vmatprep.subr.mxu0 0.0
      %1560 = vmatpush2.xpose.msra.mxu0 0.0
      %1561 = vmatprep.subr.mxu0 0.0
      %1562 = vmatpush2.xpose.msra.mxu0 0.0
      %1563 = vmatprep.subr.mxu0 0.0
      %1564 = vmatpush2.xpose.msra.mxu0 0.0
      %1565 = vmatprep.subr.mxu0 0.0
      %1566 = vmatpush2.xpose.msra.mxu0 0.0
      %1567 = vmatprep.subr.mxu0 0.0
      %1568 = vmatpush2.xpose.msra.mxu0 0.0
      %1569 = vmatprep.subr.mxu0 0.0
      %1570 = vmatpush2.xpose.msra.mxu0 0.0
      %1571 = vmatprep.subr.mxu0 0.0
      %1572 = vmatpush2.xpose.msra.mxu0 0.0
      %1573 = vmatprep.subr.mxu0 0.0
      %1574 = vmatpush2.xpose.msra.mxu0 0.0
      %1575 = vmatprep.subr.mxu0 0.0
      %1576 = vmatpush2.xpose.msra.mxu0 0.0
      %1577 = vmatprep.subr.mxu0 0.0
      %1578 = vmatpush2.xpose.msra.mxu0 0.0
      %1579 = vmatprep.subr.mxu0 0.0
      %1580 = vmatpush2.xpose.msra.mxu0 0.0
      %1581 = vmatprep.subr.mxu0 0.0
      %1582 = vmatpush2.xpose.msra.mxu0 0.0
      %1583 = vmatprep.subr.mxu0 0.0
      %1584 = vmatpush2.xpose.msra.mxu0 0.0
      %1585 = vmatprep.subr.mxu0 0.0
      %1586 = vmatpush2.xpose.msra.mxu0 0.0
      %1587 = vmatprep.subr.mxu0 0.0
      %1588 = vmatpush2.xpose.msra.mxu0 0.0
      %1589 = vmatprep.mubr.f32.mxu0 0.0
      %1590 = vmatmul.mubr.f32.gmra.mxu0 %v1521
      %v1591 = vpop.f32.mrf.mxu0
      %v1592 = vadd.f32 0.0, %v1591
      %v1593 = vpop.f32.mrf.mxu0
      %1594 = vdwg.mxu0
      %1595 = vrot.lane.b32.xlu0 %v1518, 96
      %v1596 = vpop.permute.xlu0 %1595
      %v1597 = vsel %vm760, %v1518, 0
      %v1599 = vsel %vm760, %v1596, 0
      %1601 = vmatprep.subr.mxu0 0.0
      %1602 = vmatpush1.xpose.msra.mxu0 0.0
      %1603 = vmatprep.subr.mxu0 0.0
      %1604 = vmatpush1.xpose.msra.mxu0 0.0
      %1605 = vmatprep.subr.mxu0 0.0
      %1606 = vmatpush1.xpose.msra.mxu0 0.0
      %1607 = vmatprep.subr.mxu0 0.0
      %1608 = vmatpush1.xpose.msra.mxu0 0.0
      %1609 = vmatprep.subr.mxu0 0.0
      %1610 = vmatpush1.xpose.msra.mxu0 0.0
      %1611 = vmatprep.subr.mxu0 0.0
      %1612 = vmatpush1.xpose.msra.mxu0 0.0
      %1613 = vmatprep.subr.mxu0 0.0
      %1614 = vmatpush1.xpose.msra.mxu0 0.0
      %1615 = vmatprep.subr.mxu0 0.0
      %1616 = vmatpush1.xpose.msra.mxu0 0.0
      %1617 = vmatprep.subr.mxu0 0.0
      %1618 = vmatpush1.xpose.msra.mxu0 0.0
      %1619 = vmatprep.subr.mxu0 0.0
      %1620 = vmatpush1.xpose.msra.mxu0 0.0
      %1621 = vmatprep.subr.mxu0 0.0
      %1622 = vmatpush1.xpose.msra.mxu0 0.0
      %1623 = vmatprep.subr.mxu0 0.0
      %1624 = vmatpush1.xpose.msra.mxu0 0.0
      %1625 = vmatprep.subr.mxu0 0.0
      %1626 = vmatpush1.xpose.msra.mxu0 0.0
      %1627 = vmatprep.subr.mxu0 0.0
      %1628 = vmatpush1.xpose.msra.mxu0 0.0
      %1629 = vmatprep.subr.mxu0 0.0
      %1630 = vmatpush1.xpose.msra.mxu0 0.0
      %1631 = vmatprep.subr.mxu0 0.0
      %1632 = vmatpush1.xpose.msra.mxu0 %v1599
      %1633 = vmatprep.subr.mxu0 0.0
      %1634 = vmatpush2.xpose.msra.mxu0 0.0
      %1635 = vmatprep.subr.mxu0 0.0
      %1636 = vmatpush2.xpose.msra.mxu0 0.0
      %1637 = vmatprep.subr.mxu0 0.0
      %1638 = vmatpush2.xpose.msra.mxu0 0.0
      %1639 = vmatprep.subr.mxu0 0.0
      %1640 = vmatpush2.xpose.msra.mxu0 0.0
      %1641 = vmatprep.subr.mxu0 0.0
      %1642 = vmatpush2.xpose.msra.mxu0 0.0
      %1643 = vmatprep.subr.mxu0 0.0
      %1644 = vmatpush2.xpose.msra.mxu0 0.0
      %1645 = vmatprep.subr.mxu0 0.0
      %1646 = vmatpush2.xpose.msra.mxu0 0.0
      %1647 = vmatprep.subr.mxu0 0.0
      %1648 = vmatpush2.xpose.msra.mxu0 0.0
      %1649 = vmatprep.subr.mxu0 0.0
      %1650 = vmatpush2.xpose.msra.mxu0 0.0
      %1651 = vmatprep.subr.mxu0 0.0
      %1652 = vmatpush2.xpose.msra.mxu0 0.0
      %1653 = vmatprep.subr.mxu0 0.0
      %1654 = vmatpush2.xpose.msra.mxu0 0.0
      %1655 = vmatprep.subr.mxu0 0.0
      %1656 = vmatpush2.xpose.msra.mxu0 0.0
      %1657 = vmatprep.subr.mxu0 0.0
      %1658 = vmatpush2.xpose.msra.mxu0 0.0
      %1659 = vmatprep.subr.mxu0 0.0
      %1660 = vmatpush2.xpose.msra.mxu0 0.0
      %1661 = vmatprep.subr.mxu0 0.0
      %1662 = vmatpush2.xpose.msra.mxu0 0.0
      %1663 = vmatprep.subr.mxu0 0.0
      %1664 = vmatpush2.xpose.msra.mxu0 0.0
      %1665 = vmatprep.mubr.f32.mxu0 0.0
      %1666 = vmatmul.mubr.f32.gmra.mxu0 %v1597
      %v1667 = vpop.f32.mrf.mxu0
      %v1668 = vadd.f32 0.0, %v1667
      %v1669 = vpop.f32.mrf.mxu0
      %1670 = vdwg.mxu0
      %v1671 = vmul.f32 %v1592, 0.25
      %v1672 = vmul.f32 %v1668, 0.25
      %v1673 = vsel %vm915, %v1671, -1e+30
      %v1674 = vsel %vm915, %v1672, -1e+30
      %v1675 = vsel %vm918, %v1673, -inf
      %1676 = vmax.xlane.f32.xlu0 %v1675
      %v1677 = vpop.xlane.xlu0 %1676
      %v1678 = vsel %vm918, %v1674, -inf
      %1679 = vmax.xlane.f32.xlu0 %v1678
      %v1680 = vpop.xlane.xlu0 %1679
      %v1681 = vsub.f32 %v1673, %v1677
      %v1682 = vsub.f32 %v1674, %v1680
      %v1683 = vmul.f32 %v1681, 1.442695
      %v1684 = vpow.pop %v1683
      %v1685 = vmul.f32 %v1682, 1.442695
      %v1686 = vpow.pop %v1685
      %v1687 = vsel %vm918, %v1684, 0.0
      %1688 = vadd.xlane.f32.xlu0 %v1687
      %v1689 = vpop.xlane.xlu0 %1688
      %v1690 = vsel %vm918, %v1686, 0.0
      %1691 = vadd.xlane.f32.xlu0 %v1690
      %v1692 = vpop.xlane.xlu0 %1691
      %v1693 = vrcp.pop %v1689
      %v1694 = vrcp.pop %v1692
      %v1695 = vmul.f32 %v1684, %v1693
      %v1696 = vmul.f32 %v1686, %v1694
      %1697 = vrot.lane.b32.xlu0 %v1513, 64
      %v1698 = vpop.permute.xlu0 %1697
      %v1701 = vsel %vm918, %v1695, 0
      %1703 = vmatprep.subr.mxu0 0.0
      %1704 = vmatpush1.msra.mxu0 0.0
      %1705 = vmatprep.subr.mxu0 0.0
      %1706 = vmatpush1.msra.mxu0 0.0
      %1707 = vmatprep.subr.mxu0 0.0
      %1708 = vmatpush1.msra.mxu0 0.0
      %1709 = vmatprep.subr.mxu0 0.0
      %1710 = vmatpush1.msra.mxu0 0.0
      %1711 = vmatprep.subr.mxu0 0.0
      %1712 = vmatpush1.msra.mxu0 0.0
      %1713 = vmatprep.subr.mxu0 0.0
      %1714 = vmatpush1.msra.mxu0 0.0
      %1715 = vmatprep.subr.mxu0 0.0
      %1716 = vmatpush1.msra.mxu0 0.0
      %1717 = vmatprep.subr.mxu0 0.0
      %1718 = vmatpush1.msra.mxu0 0.0
      %1719 = vmatprep.subr.mxu0 0.0
      %1720 = vmatpush1.msra.mxu0 0.0
      %1721 = vmatprep.subr.mxu0 0.0
      %1722 = vmatpush1.msra.mxu0 0.0
      %1723 = vmatprep.subr.mxu0 0.0
      %1724 = vmatpush1.msra.mxu0 0.0
      %1725 = vmatprep.subr.mxu0 0.0
      %1726 = vmatpush1.msra.mxu0 0.0
      %1727 = vmatprep.subr.mxu0 0.0
      %1728 = vmatpush1.msra.mxu0 0.0
      %1729 = vmatprep.subr.mxu0 0.0
      %1730 = vmatpush1.msra.mxu0 0.0
      %1731 = vmatprep.subr.mxu0 0.0
      %1732 = vmatpush1.msra.mxu0 0.0
      %1733 = vmatprep.subr.mxu0 0.0
      %1734 = vmatpush1.msra.mxu0 %v1698
      %1735 = vmatprep.subr.mxu0 0.0
      %1736 = vmatpush2.msra.mxu0 0.0
      %1737 = vmatprep.subr.mxu0 0.0
      %1738 = vmatpush2.msra.mxu0 0.0
      %1739 = vmatprep.subr.mxu0 0.0
      %1740 = vmatpush2.msra.mxu0 0.0
      %1741 = vmatprep.subr.mxu0 0.0
      %1742 = vmatpush2.msra.mxu0 0.0
      %1743 = vmatprep.subr.mxu0 0.0
      %1744 = vmatpush2.msra.mxu0 0.0
      %1745 = vmatprep.subr.mxu0 0.0
      %1746 = vmatpush2.msra.mxu0 0.0
      %1747 = vmatprep.subr.mxu0 0.0
      %1748 = vmatpush2.msra.mxu0 0.0
      %1749 = vmatprep.subr.mxu0 0.0
      %1750 = vmatpush2.msra.mxu0 0.0
      %1751 = vmatprep.subr.mxu0 0.0
      %1752 = vmatpush2.msra.mxu0 0.0
      %1753 = vmatprep.subr.mxu0 0.0
      %1754 = vmatpush2.msra.mxu0 0.0
      %1755 = vmatprep.subr.mxu0 0.0
      %1756 = vmatpush2.msra.mxu0 0.0
      %1757 = vmatprep.subr.mxu0 0.0
      %1758 = vmatpush2.msra.mxu0 0.0
      %1759 = vmatprep.subr.mxu0 0.0
      %1760 = vmatpush2.msra.mxu0 0.0
      %1761 = vmatprep.subr.mxu0 0.0
      %1762 = vmatpush2.msra.mxu0 0.0
      %1763 = vmatprep.subr.mxu0 0.0
      %1764 = vmatpush2.msra.mxu0 0.0
      %1765 = vmatprep.subr.mxu0 0.0
      %1766 = vmatpush2.msra.mxu0 0.0
      %1767 = vmatprep.mubr.f32.mxu0 0.0
      %1768 = vmatmul.mubr.f32.gmra.mxu0 %v1701
      %v1769 = vpop.f32.mrf.mxu0
      %v1770 = vadd.f32 0.0, %v1769
      %v1771 = vpop.f32.mrf.mxu0
      %1772 = vdwg.mxu0
      %1773 = vrot.lane.b32.xlu0 %v1518, 64
      %v1774 = vpop.permute.xlu0 %1773
      %v1777 = vsel %vm918, %v1696, 0
      %1779 = vmatprep.subr.mxu0 0.0
      %1780 = vmatpush1.msra.mxu0 0.0
      %1781 = vmatprep.subr.mxu0 0.0
      %1782 = vmatpush1.msra.mxu0 0.0
      %1783 = vmatprep.subr.mxu0 0.0
      %1784 = vmatpush1.msra.mxu0 0.0
      %1785 = vmatprep.subr.mxu0 0.0
      %1786 = vmatpush1.msra.mxu0 0.0
      %1787 = vmatprep.subr.mxu0 0.0
      %1788 = vmatpush1.msra.mxu0 0.0
      %1789 = vmatprep.subr.mxu0 0.0
      %1790 = vmatpush1.msra.mxu0 0.0
      %1791 = vmatprep.subr.mxu0 0.0
      %1792 = vmatpush1.msra.mxu0 0.0
      %1793 = vmatprep.subr.mxu0 0.0
      %1794 = vmatpush1.msra.mxu0 0.0
      %1795 = vmatprep.subr.mxu0 0.0
      %1796 = vmatpush1.msra.mxu0 0.0
      %1797 = vmatprep.subr.mxu0 0.0
      %1798 = vmatpush1.msra.mxu0 0.0
      %1799 = vmatprep.subr.mxu0 0.0
      %1800 = vmatpush1.msra.mxu0 0.0
      %1801 = vmatprep.subr.mxu0 0.0
      %1802 = vmatpush1.msra.mxu0 0.0
      %1803 = vmatprep.subr.mxu0 0.0
      %1804 = vmatpush1.msra.mxu0 0.0
      %1805 = vmatprep.subr.mxu0 0.0
      %1806 = vmatpush1.msra.mxu0 0.0
      %1807 = vmatprep.subr.mxu0 0.0
      %1808 = vmatpush1.msra.mxu0 0.0
      %1809 = vmatprep.subr.mxu0 0.0
      %1810 = vmatpush1.msra.mxu0 %v1774
      %1811 = vmatprep.subr.mxu0 0.0
      %1812 = vmatpush2.msra.mxu0 0.0
      %1813 = vmatprep.subr.mxu0 0.0
      %1814 = vmatpush2.msra.mxu0 0.0
      %1815 = vmatprep.subr.mxu0 0.0
      %1816 = vmatpush2.msra.mxu0 0.0
      %1817 = vmatprep.subr.mxu0 0.0
      %1818 = vmatpush2.msra.mxu0 0.0
      %1819 = vmatprep.subr.mxu0 0.0
      %1820 = vmatpush2.msra.mxu0 0.0
      %1821 = vmatprep.subr.mxu0 0.0
      %1822 = vmatpush2.msra.mxu0 0.0
      %1823 = vmatprep.subr.mxu0 0.0
      %1824 = vmatpush2.msra.mxu0 0.0
      %1825 = vmatprep.subr.mxu0 0.0
      %1826 = vmatpush2.msra.mxu0 0.0
      %1827 = vmatprep.subr.mxu0 0.0
      %1828 = vmatpush2.msra.mxu0 0.0
      %1829 = vmatprep.subr.mxu0 0.0
      %1830 = vmatpush2.msra.mxu0 0.0
      %1831 = vmatprep.subr.mxu0 0.0
      %1832 = vmatpush2.msra.mxu0 0.0
      %1833 = vmatprep.subr.mxu0 0.0
      %1834 = vmatpush2.msra.mxu0 0.0
      %1835 = vmatprep.subr.mxu0 0.0
      %1836 = vmatpush2.msra.mxu0 0.0
      %1837 = vmatprep.subr.mxu0 0.0
      %1838 = vmatpush2.msra.mxu0 0.0
      %1839 = vmatprep.subr.mxu0 0.0
      %1840 = vmatpush2.msra.mxu0 0.0
      %1841 = vmatprep.subr.mxu0 0.0
      %1842 = vmatpush2.msra.mxu0 0.0
      %1843 = vmatprep.mubr.f32.mxu0 0.0
      %1844 = vmatmul.mubr.f32.gmra.mxu0 %v1777
      %v1845 = vpop.f32.mrf.mxu0
      %v1846 = vadd.f32 0.0, %v1845
      %v1847 = vpop.f32.mrf.mxu0
      %1848 = vdwg.mxu0
      %1850 = vrot.lane.b32.xlu0 %v1846, 16
      %v1851 = vpop.permute.xlu0 %1850
      %v1853 = vsel %vm760, %v1770, %v1851
      %s1854 = scalar_lea.vmem %s7, 32
      %v1855 = vld [vmem:[%s1854] sm:$0xff]
      %v1856 = vld [vmem:[%s1854 + $0x8] sm:$0xff]
      %v1857 = vld [vmem:[%s1854 + $0x10] sm:$0xff]
      %v1858 = vld [vmem:[%s1854 + $0x18] sm:$0xff]
      %s1859 = scalar_lea.vmem %s8, 1
      %v1860 = vld [vmem:[%s1859] sm:$0x1]
      %v1862 = vlaneseq
      %v1863 = vshrl.u32 %v1862, 7
      %v1864 = vsub.s32 0, %v1863
      %v1865 = vrot.slane %v1860, %v1864
      %v1868 = vsel %vm642, %v1853, 0
      %1870 = vmatprep.subr.mxu0 0.0
      %1871 = vmatpush1.msra.mxu0 0.0
      %1872 = vmatprep.subr.mxu0 0.0
      %1873 = vmatpush1.msra.mxu0 0.0
      %1874 = vmatprep.subr.mxu0 0.0
      %1875 = vmatpush1.msra.mxu0 0.0
      %1876 = vmatprep.subr.mxu0 0.0
      %1877 = vmatpush1.msra.mxu0 0.0
      %1878 = vmatprep.subr.mxu0 0.0
      %1879 = vmatpush1.msra.mxu0 0.0
      %1880 = vmatprep.subr.mxu0 0.0
      %1881 = vmatpush1.msra.mxu0 0.0
      %1882 = vmatprep.subr.mxu0 0.0
      %1883 = vmatpush1.msra.mxu0 0.0
      %1884 = vmatprep.subr.mxu0 0.0
      %1885 = vmatpush1.msra.mxu0 0.0
      %1886 = vmatprep.subr.mxu0 0.0
      %1887 = vmatpush1.msra.mxu0 0.0
      %1888 = vmatprep.subr.mxu0 0.0
      %1889 = vmatpush1.msra.mxu0 0.0
      %1890 = vmatprep.subr.mxu0 0.0
      %1891 = vmatpush1.msra.mxu0 0.0
      %1892 = vmatprep.subr.mxu0 0.0
      %1893 = vmatpush1.msra.mxu0 0.0
      %1894 = vmatprep.subr.mxu0 0.0
      %1895 = vmatpush1.msra.mxu0 %v1858
      %1896 = vmatprep.subr.mxu0 0.0
      %1897 = vmatpush1.msra.mxu0 %v1857
      %1898 = vmatprep.subr.mxu0 0.0
      %1899 = vmatpush1.msra.mxu0 %v1856
      %1900 = vmatprep.subr.mxu0 0.0
      %1901 = vmatpush1.msra.mxu0 %v1855
      %1902 = vmatprep.subr.mxu0 0.0
      %1903 = vmatpush2.msra.mxu0 0.0
      %1904 = vmatprep.subr.mxu0 0.0
      %1905 = vmatpush2.msra.mxu0 0.0
      %1906 = vmatprep.subr.mxu0 0.0
      %1907 = vmatpush2.msra.mxu0 0.0
      %1908 = vmatprep.subr.mxu0 0.0
      %1909 = vmatpush2.msra.mxu0 0.0
      %1910 = vmatprep.subr.mxu0 0.0
      %1911 = vmatpush2.msra.mxu0 0.0
      %1912 = vmatprep.subr.mxu0 0.0
      %1913 = vmatpush2.msra.mxu0 0.0
      %1914 = vmatprep.subr.mxu0 0.0
      %1915 = vmatpush2.msra.mxu0 0.0
      %1916 = vmatprep.subr.mxu0 0.0
      %1917 = vmatpush2.msra.mxu0 0.0
      %1918 = vmatprep.subr.mxu0 0.0
      %1919 = vmatpush2.msra.mxu0 0.0
      %1920 = vmatprep.subr.mxu0 0.0
      %1921 = vmatpush2.msra.mxu0 0.0
      %1922 = vmatprep.subr.mxu0 0.0
      %1923 = vmatpush2.msra.mxu0 0.0
      %1924 = vmatprep.subr.mxu0 0.0
      %1925 = vmatpush2.msra.mxu0 0.0
      %1926 = vmatprep.subr.mxu0 0.0
      %1927 = vmatpush2.msra.mxu0 0.0
      %1928 = vmatprep.subr.mxu0 0.0
      %1929 = vmatpush2.msra.mxu0 0.0
      %1930 = vmatprep.subr.mxu0 0.0
      %1931 = vmatpush2.msra.mxu0 0.0
      %1932 = vmatprep.subr.mxu0 0.0
      %1933 = vmatpush2.msra.mxu0 0.0
      %1934 = vmatprep.mubr.f32.mxu0 0.0
      %1935 = vmatmul.mubr.f32.gmra.mxu0 %v1868
      %v1936 = vpop.f32.mrf.mxu0
      %v1937 = vadd.f32 %v1865, %v1936
      %v1938 = vpop.f32.mrf.mxu0
      %1939 = vdwg.mxu0
      %v1940 = vadd.f32 %v1398, %v1937
      %s1941 = scalar_lea.vmem %s9, 1
      %v1942 = vld [vmem:[%s1941] sm:$0x1]
      %s1943 = scalar_lea.vmem %s10, 1
      %v1944 = vld [vmem:[%s1943] sm:$0x1]
      %v1945 = vsel %vm642, %v1940, 0.0
      %1946 = vadd.xlane.f32.xlu0 %v1945
      %v1947 = vpop.xlane.xlu0 %1946
      %v1948 = vmul.f32 %v1947, %v646
      %v1949 = vsub.f32 %v1940, %v1948
      %v1950 = vmul.f32 %v1949, %v1949
      %v1951 = vsel %vm642, %v1950, 0.0
      %1952 = vadd.xlane.f32.xlu0 %v1951
      %v1953 = vpop.xlane.xlu0 %1952
      %v1954 = vmul.f32 %v1953, %v646
      %v1955 = vadd.f32 %v1954, 1e-05
      %v1956 = vrsqrt.pop %v1955
      %v1957 = vmul.f32 %v1949, %v1956
      %v1959 = vlaneseq
      %v1960 = vshrl.u32 %v1959, 7
      %v1961 = vsub.s32 0, %v1960
      %v1962 = vrot.slane %v1942, %v1961
      %v1964 = vmul.f32 %v1957, %v1962
      %v1966 = vlaneseq
      %v1967 = vshrl.u32 %v1966, 7
      %v1968 = vsub.s32 0, %v1967
      %v1969 = vrot.slane %v1944, %v1968
      %v1971 = vadd.f32 %v1964, %v1969
      %s1972 = scalar_lea.vmem %s11, 32
      %v1973 = vld [vmem:[%s1972] sm:$0xff]
      %v1974 = vld [vmem:[%s1972 + $0x8] sm:$0xff]
      %v1975 = vld [vmem:[%s1972 + $0x10] sm:$0xff]
      %v1976 = vld [vmem:[%s1972 + $0x18] sm:$0xff]
      %s1977 = scalar_lea.vmem %s12, 1
      %v1978 = vld [vmem:[%s1977] sm:$0x1]
      %v1980 = vlaneseq
      %v1981 = vshrl.u32 %v1980, 7
      %v1982 = vsub.s32 0, %v1981
      %v1983 = vrot.slane %v1978, %v1982
      %v1986 = vsel %vm642, %v1971, 0
      %1988 = vmatprep.subr.mxu0 0.0
      %1989 = vmatpush1.msra.mxu0 0.0
      %1990 = vmatprep.subr.mxu0 0.0
      %1991 = vmatpush1.msra.mxu0 0.0
      %1992 = vmatprep.subr.mxu0 0.0
      %1993 = vmatpush1.msra.mxu0 0.0
      %1994 = vmatprep.subr.mxu0 0.0
      %1995 = vmatpush1.msra.mxu0 0.0
      %1996 = vmatprep.subr.mxu0 0.0
      %1997 = vmatpush1.msra.mxu0 0.0
      %1998 = vmatprep.subr.mxu0 0.0
      %1999 = vmatpush1.msra.mxu0 0.0
      %2000 = vmatprep.subr.mxu0 0.0
      %2001 = vmatpush1.msra.mxu0 0.0
      %2002 = vmatprep.subr.mxu0 0.0
      %2003 = vmatpush1.msra.mxu0 0.0
      %2004 = vmatprep.subr.mxu0 0.0
      %2005 = vmatpush1.msra.mxu0 0.0
      %2006 = vmatprep.subr.mxu0 0.0
      %2007 = vmatpush1.msra.mxu0 0.0
      %2008 = vmatprep.subr.mxu0 0.0
      %2009 = vmatpush1.msra.mxu0 0.0
      %2010 = vmatprep.subr.mxu0 0.0
      %2011 = vmatpush1.msra.mxu0 0.0
      %2012 = vmatprep.subr.mxu0 0.0
      %2013 = vmatpush1.msra.mxu0 %v1976
      %2014 = vmatprep.subr.mxu0 0.0
      %2015 = vmatpush1.msra.mxu0 %v1975
      %2016 = vmatprep.subr.mxu0 0.0
      %2017 = vmatpush1.msra.mxu0 %v1974
      %2018 = vmatprep.subr.mxu0 0.0
      %2019 = vmatpush1.msra.mxu0 %v1973
      %2020 = vmatprep.subr.mxu0 0.0
      %2021 = vmatpush2.msra.mxu0 0.0
      %2022 = vmatprep.subr.mxu0 0.0
      %2023 = vmatpush2.msra.mxu0 0.0
      %2024 = vmatprep.subr.mxu0 0.0
      %2025 = vmatpush2.msra.mxu0 0.0
      %2026 = vmatprep.subr.mxu0 0.0
      %2027 = vmatpush2.msra.mxu0 0.0
      %2028 = vmatprep.subr.mxu0 0.0
      %2029 = vmatpush2.msra.mxu0 0.0
      %2030 = vmatprep.subr.mxu0 0.0
      %2031 = vmatpush2.msra.mxu0 0.0
      %2032 = vmatprep.subr.mxu0 0.0
      %2033 = vmatpush2.msra.mxu0 0.0
      %2034 = vmatprep.subr.mxu0 0.0
      %2035 = vmatpush2.msra.mxu0 0.0
      %2036 = vmatprep.subr.mxu0 0.0
      %2037 = vmatpush2.msra.mxu0 0.0
      %2038 = vmatprep.subr.mxu0 0.0
      %2039 = vmatpush2.msra.mxu0 0.0
      %2040 = vmatprep.subr.mxu0 0.0
      %2041 = vmatpush2.msra.mxu0 0.0
      %2042 = vmatprep.subr.mxu0 0.0
      %2043 = vmatpush2.msra.mxu0 0.0
      %2044 = vmatprep.subr.mxu0 0.0
      %2045 = vmatpush2.msra.mxu0 0.0
      %2046 = vmatprep.subr.mxu0 0.0
      %2047 = vmatpush2.msra.mxu0 0.0
      %2048 = vmatprep.subr.mxu0 0.0
      %2049 = vmatpush2.msra.mxu0 0.0
      %2050 = vmatprep.subr.mxu0 0.0
      %2051 = vmatpush2.msra.mxu0 0.0
      %2052 = vmatprep.mubr.f32.mxu0 0.0
      %2053 = vmatmul.mubr.f32.gmra.mxu0 %v1986
      %v2054 = vpop.f32.mrf.mxu0
      %v2055 = vadd.f32 %v1983, %v2054
      %v2056 = vpop.f32.mrf.mxu0
      %2057 = vdwg.mxu0
      %v2058 = vmul.f32 %v2055, 0.5
      %v2059 = vmul.f32 %v2055, 0.044715
      %v2060 = vmul.f32 %v2059, %v2055
      %v2061 = vmul.f32 %v2060, %v2055
      %v2062 = vadd.f32 %v2055, %v2061
      %v2063 = vmul.f32 %v2062, 0.7978846
      %v2064 = vtanh.pop %v2063
      %v2065 = vadd.f32 %v2064, 1.0
      %v2066 = vmul.f32 %v2058, %v2065
      %s2067 = scalar_lea.vmem %s13, 128
      %v2068 = vld [vmem:[%s2067] sm:$0xff]
      %v2069 = vld [vmem:[%s2067 + $0x8] sm:$0xff]
      %v2070 = vld [vmem:[%s2067 + $0x10] sm:$0xff]
      %v2071 = vld [vmem:[%s2067 + $0x18] sm:$0xff]
      %v2072 = vld [vmem:[%s2067 + $0x20] sm:$0xff]
      %v2073 = vld [vmem:[%s2067 + $0x28] sm:$0xff]
      %v2074 = vld [vmem:[%s2067 + $0x30] sm:$0xff]
      %v2075 = vld [vmem:[%s2067 + $0x38] sm:$0xff]
      %v2076 = vld [vmem:[%s2067 + $0x40] sm:$0xff]
      %v2077 = vld [vmem:[%s2067 + $0x48] sm:$0xff]
      %v2078 = vld [vmem:[%s2067 + $0x50] sm:$0xff]
      %v2079 = vld [vmem:[%s2067 + $0x58] sm:$0xff]
      %v2080 = vld [vmem:[%s2067 + $0x60] sm:$0xff]
      %v2081 = vld [vmem:[%s2067 + $0x68] sm:$0xff]
      %v2082 = vld [vmem:[%s2067 + $0x70] sm:$0xff]
      %v2083 = vld [vmem:[%s2067 + $0x78] sm:$0xff]
      %s2084 = scalar_lea.vmem %s14, 1
      %v2085 = vld [vmem:[%s2084] sm:$0x1]
      %v2087 = vlaneseq
      %v2088 = vshrl.u32 %v2087, 7
      %v2089 = vsub.s32 0, %v2088
      %v2090 = vrot.slane %v2085, %v2089
      %2092 = vmatprep.subr.mxu0 0.0
      %2093 = vmatpush1.msra.mxu0 %v2083
      %2094 = vmatprep.subr.mxu0 0.0
      %2095 = vmatpush1.msra.mxu0 %v2082
      %2096 = vmatprep.subr.mxu0 0.0
      %2097 = vmatpush1.msra.mxu0 %v2081
      %2098 = vmatprep.subr.mxu0 0.0
      %2099 = vmatpush1.msra.mxu0 %v2080
      %2100 = vmatprep.subr.mxu0 0.0
      %2101 = vmatpush1.msra.mxu0 %v2079
      %2102 = vmatprep.subr.mxu0 0.0
      %2103 = vmatpush1.msra.mxu0 %v2078
      %2104 = vmatprep.subr.mxu0 0.0
      %2105 = vmatpush1.msra.mxu0 %v2077
      %2106 = vmatprep.subr.mxu0 0.0
      %2107 = vmatpush1.msra.mxu0 %v2076
      %2108 = vmatprep.subr.mxu0 0.0
      %2109 = vmatpush1.msra.mxu0 %v2075
      %2110 = vmatprep.subr.mxu0 0.0
      %2111 = vmatpush1.msra.mxu0 %v2074
      %2112 = vmatprep.subr.mxu0 0.0
      %2113 = vmatpush1.msra.mxu0 %v2073
      %2114 = vmatprep.subr.mxu0 0.0
      %2115 = vmatpush1.msra.mxu0 %v2072
      %2116 = vmatprep.subr.mxu0 0.0
      %2117 = vmatpush1.msra.mxu0 %v2071
      %2118 = vmatprep.subr.mxu0 0.0
      %2119 = vmatpush1.msra.mxu0 %v2070
      %2120 = vmatprep.subr.mxu0 0.0
      %2121 = vmatpush1.msra.mxu0 %v2069
      %2122 = vmatprep.subr.mxu0 0.0
      %2123 = vmatpush1.msra.mxu0 %v2068
      %2124 = vmatprep.subr.mxu0 0.0
      %2125 = vmatpush2.msra.mxu0 0.0
      %2126 = vmatprep.subr.mxu0 0.0
      %2127 = vmatpush2.msra.mxu0 0.0
      %2128 = vmatprep.subr.mxu0 0.0
      %2129 = vmatpush2.msra.mxu0 0.0
      %2130 = vmatprep.subr.mxu0 0.0
      %2131 = vmatpush2.msra.mxu0 0.0
      %2132 = vmatprep.subr.mxu0 0.0
      %2133 = vmatpush2.msra.mxu0 0.0
      %2134 = vmatprep.subr.mxu0 0.0
      %2135 = vmatpush2.msra.mxu0 0.0
      %2136 = vmatprep.subr.mxu0 0.0
      %2137 = vmatpush2.msra.mxu0 0.0
      %2138 = vmatprep.subr.mxu0 0.0
      %2139 = vmatpush2.msra.mxu0 0.0
      %2140 = vmatprep.subr.mxu0 0.0
      %2141 = vmatpush2.msra.mxu0 0.0
      %2142 = vmatprep.subr.mxu0 0.0
      %2143 = vmatpush2.msra.mxu0 0.0
      %2144 = vmatprep.subr.mxu0 0.0
      %2145 = vmatpush2.msra.mxu0 0.0
      %2146 = vmatprep.subr.mxu0 0.0
      %2147 = vmatpush2.msra.mxu0 0.0
      %2148 = vmatprep.subr.mxu0 0.0
      %2149 = vmatpush2.msra.mxu0 0.0
      %2150 = vmatprep.subr.mxu0 0.0
      %2151 = vmatpush2.msra.mxu0 0.0
      %2152 = vmatprep.subr.mxu0 0.0
      %2153 = vmatpush2.msra.mxu0 0.0
      %2154 = vmatprep.subr.mxu0 0.0
      %2155 = vmatpush2.msra.mxu0 0.0
      %2156 = vmatprep.mubr.f32.mxu0 0.0
      %2157 = vmatmul.mubr.f32.gmra.mxu0 %v2066
      %v2158 = vpop.f32.mrf.mxu0
      %v2159 = vadd.f32 %v2090, %v2158
      %v2160 = vpop.f32.mrf.mxu0
      %2161 = vdwg.mxu0
      %v2162 = vadd.f32 %v1940, %v2159
      %v2163 = vld [vmem:[%s15] sm:$0x1]
      %v2164 = vld [vmem:[%s16] sm:$0x1]
      %v2165 = vsel %vm642, %v2162, 0.0
      %2166 = vadd.xlane.f32.xlu0 %v2165
      %v2167 = vpop.xlane.xlu0 %2166
      %v2168 = vmul.f32 %v2167, %v646
      %v2169 = vsub.f32 %v2162, %v2168
      %v2170 = vmul.f32 %v2169, %v2169
      %v2171 = vsel %vm642, %v2170, 0.0
      %2172 = vadd.xlane.f32.xlu0 %v2171
      %v2173 = vpop.xlane.xlu0 %2172
      %v2174 = vmul.f32 %v2173, %v646
      %v2175 = vadd.f32 %v2174, 1e-05
      %v2176 = vrsqrt.pop %v2175
      %v2177 = vmul.f32 %v2169, %v2176
      %v2179 = vlaneseq
      %v2180 = vshrl.u32 %v2179, 7
      %v2181 = vsub.s32 0, %v2180
      %v2182 = vrot.slane %v2163, %v2181
      %v2184 = vmul.f32 %v2177, %v2182
      %v2186 = vlaneseq
      %v2187 = vshrl.u32 %v2186, 7
      %v2188 = vsub.s32 0, %v2187
      %v2189 = vrot.slane %v2164, %v2188
      %v2191 = vadd.f32 %v2184, %v2189
      %v2193 = vsel %vm642, %v2191, 0
      %v2196 = vsel %vm642, %v545, 0
      %v2199 = vsel %vm642, %v546, 0
      %v2202 = vsel %vm642, %v547, 0
      %v2205 = vsel %vm642, %v548, 0
      %v2208 = vsel %vm642, %v549, 0
      %v2211 = vsel %vm642, %v550, 0
      %v2214 = vsel %vm642, %v551, 0
      %v2217 = vsel %vm642, %v552, 0
      %v2220 = vsel %vm642, %v553, 0
      %v2223 = vsel %vm642, %v554, 0
      %v2226 = vsel %vm642, %v555, 0
      %v2229 = vsel %vm642, %v556, 0
      %v2232 = vsel %vm642, %v557, 0
      %v2235 = vsel %vm642, %v558, 0
      %v2238 = vsel %vm642, %v559, 0
      %v2241 = vsel %vm642, %v560, 0
      %2243 = vmatprep.subr.mxu0 0.0
      %2244 = vmatpush1.xpose.msra.mxu0 %v2241
      %2245 = vmatprep.subr.mxu0 0.0
      %2246 = vmatpush1.xpose.msra.mxu0 %v2238
      %2247 = vmatprep.subr.mxu0 0.0
      %2248 = vmatpush1.xpose.msra.mxu0 %v2235
      %2249 = vmatprep.subr.mxu0 0.0
      %2250 = vmatpush1.xpose.msra.mxu0 %v2232
      %2251 = vmatprep.subr.mxu0 0.0
      %2252 = vmatpush1.xpose.msra.mxu0 %v2229
      %2253 = vmatprep.subr.mxu0 0.0
      %2254 = vmatpush1.xpose.msra.mxu0 %v2226
      %2255 = vmatprep.subr.mxu0 0.0
      %2256 = vmatpush1.xpose.msra.mxu0 %v2223
      %2257 = vmatprep.subr.mxu0 0.0
      %2258 = vmatpush1.xpose.msra.mxu0 %v2220
      %2259 = vmatprep.subr.mxu0 0.0
      %2260 = vmatpush1.xpose.msra.mxu0 %v2217
      %2261 = vmatprep.subr.mxu0 0.0
      %2262 = vmatpush1.xpose.msra.mxu0 %v2214
      %2263 = vmatprep.subr.mxu0 0.0
      %2264 = vmatpush1.xpose.msra.mxu0 %v2211
      %2265 = vmatprep.subr.mxu0 0.0
      %2266 = vmatpush1.xpose.msra.mxu0 %v2208
      %2267 = vmatprep.subr.mxu0 0.0
      %2268 = vmatpush1.xpose.msra.mxu0 %v2205
      %2269 = vmatprep.subr.mxu0 0.0
      %2270 = vmatpush1.xpose.msra.mxu0 %v2202
      %2271 = vmatprep.subr.mxu0 0.0
      %2272 = vmatpush1.xpose.msra.mxu0 %v2199
      %2273 = vmatprep.subr.mxu0 0.0
      %2274 = vmatpush1.xpose.msra.mxu0 %v2196
      %2275 = vmatprep.subr.mxu0 0.0
      %2276 = vmatpush2.xpose.msra.mxu0 0.0
      %2277 = vmatprep.subr.mxu0 0.0
      %2278 = vmatpush2.xpose.msra.mxu0 0.0
      %2279 = vmatprep.subr.mxu0 0.0
      %2280 = vmatpush2.xpose.msra.mxu0 0.0
      %2281 = vmatprep.subr.mxu0 0.0
      %2282 = vmatpush2.xpose.msra.mxu0 0.0
      %2283 = vmatprep.subr.mxu0 0.0
      %2284 = vmatpush2.xpose.msra.mxu0 0.0
      %2285 = vmatprep.subr.mxu0 0.0
      %2286 = vmatpush2.xpose.msra.mxu0 0.0
      %2287 = vmatprep.subr.mxu0 0.0
      %2288 = vmatpush2.xpose.msra.mxu0 0.0
      %2289 = vmatprep.subr.mxu0 0.0
      %2290 = vmatpush2.xpose.msra.mxu0 0.0
      %2291 = vmatprep.subr.mxu0 0.0
      %2292 = vmatpush2.xpose.msra.mxu0 0.0
      %2293 = vmatprep.subr.mxu0 0.0
      %2294 = vmatpush2.xpose.msra.mxu0 0.0
      %2295 = vmatprep.subr.mxu0 0.0
      %2296 = vmatpush2.xpose.msra.mxu0 0.0
      %2297 = vmatprep.subr.mxu0 0.0
      %2298 = vmatpush2.xpose.msra.mxu0 0.0
      %2299 = vmatprep.subr.mxu0 0.0
      %2300 = vmatpush2.xpose.msra.mxu0 0.0
      %2301 = vmatprep.subr.mxu0 0.0
      %2302 = vmatpush2.xpose.msra.mxu0 0.0
      %2303 = vmatprep.subr.mxu0 0.0
      %2304 = vmatpush2.xpose.msra.mxu0 0.0
      %2305 = vmatprep.subr.mxu0 0.0
      %2306 = vmatpush2.xpose.msra.mxu0 0.0
      %2307 = vmatprep.mubr.f32.mxu0 0.0
      %2308 = vmatmul.mubr.f32.gmra.mxu0 %v2193
      %v2309 = vpop.f32.mrf.mxu0
      %v2310 = vadd.f32 0.0, %v2309
      %v2311 = vpop.f32.mrf.mxu0
      %2312 = vdwg.mxu0
      %2313 = vst [vmem:[%s543] sm:$0xff] %v2310
      %p2314 = scmp.lt.s32.totalorder %s28, 1
      %s2315 = scalar_select %p2314, %s28, 1
      %s2316 = smul.addr %s2315, 8
      %s2317 = scalar_lea.vmem %s17, %s2316
      // Predicated region
      $region89: #{gpt_forward.1} parent=87 // pred_check
        %p2318 = pneg %p408
      $region90: #{gpt_forward.1} parent=87 // pred_check_branch
        %2320 = sbr.rel (%p2318) target = $region92
      $region91: #{gpt_forward.1} parent=87 // pred_region
        _
      $region92: #{gpt_forward.1} parent=87 // pred_fallthru
        _
    $region88: #{gpt_forward.1} parent=5 // pred_fallthru
      _
    %p2321 = scmp.le.s32.totalorder 2, %s23
    // Predicated region
    $region93: #{gpt_forward.1} parent=5 // pred_check
      %p2322 = pneg %p2321
    $region94: #{gpt_forward.1} parent=5 // pred_check_branch
      %2324 = sbr.rel (%p2322) target = $region96
    $region95: #{gpt_forward.1} parent=5 // pred_region
      %s2325 = ssub.s32 %s23, 2
      // Predicated region
      $region97: #{gpt_forward.1} parent=95 // pred_check
        %p2326 = pneg %p414
      $region98: #{gpt_forward.1} parent=95 // pred_check_branch
        %2328 = sbr.rel (%p2326) target = $region100
      $region99: #{gpt_forward.1} parent=95 // pred_region
        %p2329 = scmp.lt.s32.totalorder %s29, 1
        %s2330 = scalar_select %p2329, %s29, 1
        %s2331 = smul.addr %s2330, 8
        %s2332 = scalar_lea.vmem %s17, %s2331
      $region100: #{gpt_forward.1} parent=95 // pred_fallthru
        _
    $region96: #{gpt_forward.1} parent=5 // pred_fallthru
      _
  $region6: #{gpt_forward.1} parent=0 // loop_footer
    %s27 = sadd.s32 1, %s23
  $region7: #{gpt_forward.1} parent=0 // loop_footer_branch
    %22 = sbr.rel target = $region3
  $region8: #{gpt_forward.1} parent=0 // loop_exit
    _

</llo_original>
